<compile_context>
chip_gen: v7x
topology: tpu7x:2x2x1
jax: 0.10.0
libtpu: 0.0.40
codegen_flags: <defaults>
</compile_context>

<pallas_src>
import functools
import math

import jax
import jax.numpy as jnp
from jax.experimental import pallas as pl
from jax.experimental.pallas import tpu as pltpu


def _cdiv(a, b):
    return -(-a // b)


def _round_up(a, b):
    return ((a + b - 1) // b) * b


def _vmem_capacity_bytes():
    """Physical VMEM per TensorCore; conservative 64 MiB fallback (v7x)."""
    try:
        info = pltpu.get_tpu_info()
        cap = getattr(info, "vmem_capacity_bytes", None)
        if cap:
            return int(cap)
    except Exception:
        pass
    return 64 * 1024 * 1024


def _num_tensorcores():
    """TensorCores per chip if discoverable; default 1 (v5e/v6e behaviour)."""
    try:
        info = pltpu.get_tpu_info()
        for name in ("num_cores", "num_cores_per_chip", "cores_per_chip",
                     "core_count", "num_tensorcores"):
            v = getattr(info, name, None)
            if v:
                return int(v)
    except Exception:
        pass
    return 1


def _gate_blend(x_raw, x_norm, thr, alpha, tail_dtype):
    # sigmoid(z) == 0.5 * (tanh(0.5*z) + 1): one EUP op instead of exp+divide.
    x = x_raw.astype(tail_dtype)
    xn = x_norm.astype(tail_dtype)
    t = thr.astype(tail_dtype)
    a = alpha.astype(tail_dtype)
    gate = 0.5 * (jnp.tanh(0.5 * (jnp.abs(xn) - t)) + 1.0)
    # alpha*(gate*x) + (1-alpha)*x == x * (1 + alpha*(gate - 1))
    return jnp.clip(x * (1.0 + a * (gate - 1.0)), -100.0, 100.0)


def _etl_kernel_plain(x_ref, params_ref, o_ref, *, tail_dtype):
    # x_ref: (TR, D) tile; params_ref: (4, D) = [gamma; beta; threshold; alpha]
    x32 = x_ref[...].astype(jnp.float32)
    gamma = params_ref[0:1, :]
    beta = params_ref[1:2, :]
    thr = params_ref[2:3, :]
    alpha = params_ref[3:4, :]

    mean = jnp.mean(x32, axis=-1, keepdims=True)
    centered = x32 - mean
    var = jnp.mean(centered * centered, axis=-1, keepdims=True)
    x_norm = centered * jax.lax.rsqrt(var + 1e-5) * gamma + beta

    o_ref[...] = _gate_blend(x_ref[...], x_norm, thr, alpha,
                             tail_dtype).astype(o_ref.dtype)


def _etl_kernel_packed(x_ref, params_ref, segmat_ref, o_ref, *, inv_d, tail_dtype):
    # x_ref: (TR, Dp) tile holding g = Dp//D original rows per packed row.
    # segmat_ref: (Dp, Dp) block-diagonal ones matrix -> segmented sum on the
    # otherwise-idle MXU.
    x32 = x_ref[...].astype(jnp.float32)
    gamma = params_ref[0:1, :]
    beta = params_ref[1:2, :]
    thr = params_ref[2:3, :]
    alpha = params_ref[3:4, :]
    m = segmat_ref[...]

    dims = (((1,), (0,)), ((), ()))
    # Two *independent* segmented sums (E[x] and E[x^2]) instead of the serial
    # mean -> centered -> reduce chain.  var = E[x^2] - mean^2 (clamped >= 0);
    # mild cancellation risk for large-mean/low-variance rows, acceptable here.
    s1 = jax.lax.dot_general(x32, m, dims, preferred_element_type=jnp.float32,
                             precision=jax.lax.Precision.HIGHEST)
    s2 = jax.lax.dot_general(x32 * x32, m, dims,
                             preferred_element_type=jnp.float32,
                             precision=jax.lax.Precision.HIGHEST)
    mean = s1 * inv_d
    var = jnp.maximum(s2 * inv_d - mean * mean, 0.0)
    x_norm = (x32 - mean) * jax.lax.rsqrt(var + 1e-5) * gamma + beta

    o_ref[...] = _gate_blend(x_ref[...], x_norm, thr, alpha,
                             tail_dtype).astype(o_ref.dtype)


def emergent_threshold_forward(x, gamma, beta, running_var, adaptive_threshold,
                               *, max_row_tile=8192):
    """Eval-mode forward. x: (B, S, D); returns (B, S, D) in x.dtype."""
    B, S, D = x.shape
    rows = B * S
    out_dtype = x.dtype
    itemsize = jnp.dtype(out_dtype).itemsize

    # ---- one-time (D,)-sized hoists (wrapper side, tiny XLA ops) -------------
    alpha = jax.nn.sigmoid(adaptive_threshold.astype(jnp.float32).reshape(-1)[0])
    threshold = alpha * jnp.sqrt(jnp.maximum(running_var.astype(jnp.float32), 1e-6))

    # ---- lane packing: g rows per multiple-of-128-lane packed row -----------
    # Only when rows % g == 0 so the pack is a FREE reshape (no jnp.pad copy).
    g = 1
    if D % 128 != 0:
        cand = math.lcm(D, 128) // D
        if cand > 1 and cand * D <= 512 and rows % cand == 0:
            g = cand
    Dp = g * D
    p_rows = rows // g

    # ---- generation-aware VMEM budget / tile sizing ---------------------------
    vmem_cap = _vmem_capacity_bytes()                       # 128 MiB v5e/v6e, 64 MiB v7x
    vmem_limit = int(min(96 << 20, max(32 << 20, (vmem_cap * 3) // 4)))
    # Resident constants (double-buffered): params (4,Dp) + segmat (Dp,Dp).
    const_bytes = 2 * 4 * Dp * 4 + (2 * Dp * Dp * 4 if g > 1 else 0)
    # Per packed row: 2x double-buffered in + out (I/O dtype) + ~3 f32 temps.
    per_row_bytes = Dp * (4 * itemsize + 3 * 4)
    budget = max(per_row_bytes, vmem_limit - const_bytes - (4 << 20))
    sub = 8 * max(1, 4 // itemsize)                         # 8 f32 / 16 bf16 sublanes
    cap_rows = max(sub, (budget // per_row_bytes) // sub * sub)
    row_cap = max(sub, min(max_row_tile, cap_rows) // sub * sub)

    n_cores = _num_tensorcores()
    if n_cores > 1 and p_rows > sub:
        # Split across TensorCores even when one tile would fit (v7x megacore).
        row_cap = min(row_cap, max(sub, _round_up(_cdiv(p_rows, n_cores), sub)))

    if p_rows <= row_cap:
        row_tile = p_rows               # full-extent block: always layout-legal
    else:
        row_tile = row_cap
        steps = _cdiv(p_rows, row_tile)
        if n_cores > 1 and steps % 2 == 1:
            # Prefer an even step count so both TCs get equal work (best effort).
            alt = _round_up(_cdiv(p_rows, steps + 1), sub)
            row_tile = min(row_tile, max(sub, alt))
    grid_steps = _cdiv(p_rows, row_tile)

    # ---- free-view pack (no pad, no slice) ------------------------------------
    xp = x.reshape(p_rows, Dp)

    # Single constant (4, Dp) parameter block: gamma, beta, threshold, alpha.
    params = jnp.stack([
        jnp.tile(gamma.astype(jnp.float32), g),
        jnp.tile(beta.astype(jnp.float32), g),
        jnp.tile(threshold, g),
        jnp.broadcast_to(alpha, (Dp,)),
    ], axis=0)

    # bf16 elementwise tail only when the I/O is bf16 (v6e/v7x VPU/EUP path).
    tail_dtype = out_dtype if jnp.dtype(out_dtype) == jnp.bfloat16 else jnp.float32

    x_spec = pl.BlockSpec((row_tile, Dp), lambda i: (i, 0))
    params_spec = pl.BlockSpec((4, Dp), lambda i: (0, 0))
    out_spec = pl.BlockSpec((row_tile, Dp), lambda i: (i, 0))

    if g > 1:
        seg = jnp.arange(Dp, dtype=jnp.int32) // D
        segmat = (seg[:, None] == seg[None, :]).astype(jnp.float32)   # (Dp, Dp)
        kernel = functools.partial(_etl_kernel_packed, inv_d=1.0 / D,
                                   tail_dtype=tail_dtype)
        in_specs = [x_spec, params_spec, pl.BlockSpec((Dp, Dp), lambda i: (0, 0))]
        args = (xp, params, segmat)
    else:
        kernel = functools.partial(_etl_kernel_plain, tail_dtype=tail_dtype)
        in_specs = [x_spec, params_spec]
        args = (xp, params)

    outp = pl.pallas_call(
        kernel,
        out_shape=jax.ShapeDtypeStruct((p_rows, Dp), out_dtype),
        grid_spec=pltpu.PrefetchScalarGridSpec(
            num_scalar_prefetch=0,
            grid=(grid_steps,),
            in_specs=in_specs,
            out_specs=out_spec),
        compiler_params=pltpu.CompilerParams(
            dimension_semantics=("parallel",),
            vmem_limit_bytes=vmem_limit),
    )(*args)

    return outp.reshape(B, S, D)


def _reference_forward(x, gamma, beta, running_var, adaptive_threshold):
    mean = jnp.mean(x, axis=-1, keepdims=True)
    var = jnp.mean((x - mean) ** 2, axis=-1, keepdims=True)
    x_norm = (x - mean) / jnp.sqrt(var + 1e-5) * gamma + beta
    alpha = jax.nn.sigmoid(adaptive_threshold)[0]
    threshold = alpha * jnp.sqrt(jnp.maximum(running_var, 1e-6))
    gate = jax.nn.sigmoid(jnp.abs(x_norm) - threshold.reshape(1, 1, -1))
    return jnp.clip(alpha * (gate * x) + (1.0 - alpha) * x, -100.0, 100.0)


def _run_case(key, B, S, D, **kwargs):
    kx, kg, kb, kv = jax.random.split(key, 4)
    x = jax.random.normal(kx, (B, S, D), dtype=jnp.float32)
    gamma = jnp.ones((D,), jnp.float32) + 0.1 * jax.random.normal(kg, (D,), jnp.float32)
    beta = 0.1 * jax.random.normal(kb, (D,), jnp.float32)
    running_var = jnp.abs(1.0 + 0.1 * jax.random.normal(kv, (D,), jnp.float32))
    adaptive_threshold = jnp.full((1,), 0.5, jnp.float32)   # torch.ones(1)*0.5

    out = jax.block_until_ready(
        emergent_threshold_forward(x, gamma, beta, running_var,
                                   adaptive_threshold, **kwargs))
    ref = _reference_forward(x, gamma, beta, running_var, adaptive_threshold)
    assert out.shape == (B, S, D)
    assert jnp.allclose(out, ref, atol=5e-5, rtol=5e-5), \
        f"mismatch vs reference for shape {(B, S, D)}"


if __name__ == "__main__":
    key = jax.random.PRNGKey(0)
    k1, k2, k3, k4, k5 = jax.random.split(key, 5)

    # 1) feature_dim=32, rows % 4 == 0 -> lane-packed path (Dp=128), 1 step.
    _run_case(k1, 2, 8, 32)

    # 2) feature_dim=128 -> plain lane-dense path.
    _run_case(k2, 2, 16, 128)

    # 3) feature_dim=32 but rows=15 (not a multiple of g) -> plain fallback
    #    with a sub-128-lane block (no pad/slice copies; documented perf cliff).
    _run_case(k3, 3, 5, 32)

    # 4) feature_dim=96 -> generalized packing (g=4, Dp=384 lanes).
    _run_case(k4, 2, 8, 96)

    # 5) multi-step grid with a ragged last block (20 rows, tile of 8 rows).
    _run_case(k5, 2, 10, 128, max_row_tile=8)

    print("KERNEL_OK")
</pallas_src>

<mosaic_0001>
module attributes {stable_mosaic.version = 11 : i64} {
  func.func @_etl_kernel_packed(%arg0: i32, %arg1: memref<4x128xf32, #tpu.memory_space<vmem>>, %arg2: memref<4x128xf32, #tpu.memory_space<vmem>>, %arg3: memref<128x128xf32, #tpu.memory_space<vmem>>, %arg4: memref<4x128xf32, #tpu.memory_space<vmem>>) attributes {dimension_semantics = [#tpu.dimension_semantics<parallel>], iteration_bounds = array<i64: 1>, scalar_prefetch = 0 : i64, scratch_operands = 0 : i64, tpu.core_type = #tpu.core_type<tc>, window_params = [{transform_indices = @transform_0, window_bounds = array<i64: 4, 128>}, {pipeline_mode = #tpu.pipeline_mode<synchronous>, transform_indices = @transform_1, window_bounds = array<i64: 4, 128>}, {pipeline_mode = #tpu.pipeline_mode<synchronous>, transform_indices = @transform_2, window_bounds = array<i64: 128, 128>}, {transform_indices = @transform_3, window_bounds = array<i64: 4, 128>}]} {
    %c0 = arith.constant 0 : index
    %c0_0 = arith.constant 0 : index
    %0 = vector.load %arg1[%c0, %c0_0] : memref<4x128xf32, #tpu.memory_space<vmem>>, vector<4x128xf32>
    %c0_1 = arith.constant 0 : index
    %c0_2 = arith.constant 0 : index
    %1 = vector.load %arg2[%c0_1, %c0_2] : memref<4x128xf32, #tpu.memory_space<vmem>>, vector<1x128xf32>
    %c1 = arith.constant 1 : index
    %c0_3 = arith.constant 0 : index
    %2 = vector.load %arg2[%c1, %c0_3] : memref<4x128xf32, #tpu.memory_space<vmem>>, vector<1x128xf32>
    %c2 = arith.constant 2 : index
    %c0_4 = arith.constant 0 : index
    %3 = vector.load %arg2[%c2, %c0_4] : memref<4x128xf32, #tpu.memory_space<vmem>>, vector<1x128xf32>
    %c3 = arith.constant 3 : index
    %c0_5 = arith.constant 0 : index
    %4 = vector.load %arg2[%c3, %c0_5] : memref<4x128xf32, #tpu.memory_space<vmem>>, vector<1x128xf32>
    %c0_6 = arith.constant 0 : index
    %c0_7 = arith.constant 0 : index
    %5 = vector.load %arg3[%c0_6, %c0_7] : memref<128x128xf32, #tpu.memory_space<vmem>>, vector<128x128xf32>
    %cst = arith.constant dense<0.000000e+00> : vector<4x128xf32>
    %6 = tpu.matmul %0, %5, %cst {dimension_numbers = #tpu.dot_dimension_numbers<[1], [0], [0], [1], [0, 0, 1, 1], [], []>, precision = #tpu.contract_precision<fp32>} : vector<4x128xf32>, vector<128x128xf32>, vector<4x128xf32> -> vector<4x128xf32>
    %7 = arith.mulf %0, %0 : vector<4x128xf32>
    %cst_8 = arith.constant dense<0.000000e+00> : vector<4x128xf32>
    %8 = tpu.matmul %7, %5, %cst_8 {dimension_numbers = #tpu.dot_dimension_numbers<[1], [0], [0], [1], [0, 0, 1, 1], [], []>, precision = #tpu.contract_precision<fp32>} : vector<4x128xf32>, vector<128x128xf32>, vector<4x128xf32> -> vector<4x128xf32>
    %cst_9 = arith.constant 3.125000e-02 : f32
    %9 = vector.broadcast %cst_9 : f32 to vector<4x128xf32>
    %10 = arith.mulf %6, %9 : vector<4x128xf32>
    %cst_10 = arith.constant 3.125000e-02 : f32
    %11 = vector.broadcast %cst_10 : f32 to vector<4x128xf32>
    %12 = arith.mulf %8, %11 : vector<4x128xf32>
    %13 = arith.mulf %10, %10 : vector<4x128xf32>
    %14 = arith.subf %12, %13 : vector<4x128xf32>
    %cst_11 = arith.constant 0.000000e+00 : f32
    %15 = vector.broadcast %cst_11 : f32 to vector<4x128xf32>
    %16 = arith.maximumf %14, %15 : vector<4x128xf32>
    %17 = arith.subf %0, %10 : vector<4x128xf32>
    %cst_12 = arith.constant 9.99999974E-6 : f32
    %18 = vector.broadcast %cst_12 : f32 to vector<4x128xf32>
    %19 = arith.addf %16, %18 : vector<4x128xf32>
    %20 = math.rsqrt %19 : vector<4x128xf32>
    %21 = arith.mulf %17, %20 : vector<4x128xf32>
    %22 = vector.broadcast %1 : vector<1x128xf32> to vector<4x128xf32>
    %23 = arith.mulf %21, %22 : vector<4x128xf32>
    %24 = vector.broadcast %2 : vector<1x128xf32> to vector<4x128xf32>
    %25 = arith.addf %23, %24 : vector<4x128xf32>
    %c0_13 = arith.constant 0 : index
    %c0_14 = arith.constant 0 : index
    %26 = vector.load %arg1[%c0_13, %c0_14] : memref<4x128xf32, #tpu.memory_space<vmem>>, vector<4x128xf32>
    %27 = math.absf %25 : vector<4x128xf32>
    %28 = vector.broadcast %3 : vector<1x128xf32> to vector<4x128xf32>
    %29 = arith.subf %27, %28 : vector<4x128xf32>
    %cst_15 = arith.constant 5.000000e-01 : f32
    %30 = vector.broadcast %cst_15 : f32 to vector<4x128xf32>
    %31 = arith.mulf %30, %29 : vector<4x128xf32>
    %32 = math.tanh %31 : vector<4x128xf32>
    %cst_16 = arith.constant 1.000000e+00 : f32
    %33 = vector.broadcast %cst_16 : f32 to vector<4x128xf32>
    %34 = arith.addf %32, %33 : vector<4x128xf32>
    %cst_17 = arith.constant 5.000000e-01 : f32
    %35 = vector.broadcast %cst_17 : f32 to vector<4x128xf32>
    %36 = arith.mulf %35, %34 : vector<4x128xf32>
    %cst_18 = arith.constant 1.000000e+00 : f32
    %37 = vector.broadcast %cst_18 : f32 to vector<4x128xf32>
    %38 = arith.subf %36, %37 : vector<4x128xf32>
    %39 = vector.broadcast %4 : vector<1x128xf32> to vector<4x128xf32>
    %40 = arith.mulf %39, %38 : vector<4x128xf32>
    %cst_19 = arith.constant 1.000000e+00 : f32
    %41 = vector.broadcast %cst_19 : f32 to vector<4x128xf32>
    %42 = arith.addf %41, %40 : vector<4x128xf32>
    %43 = arith.mulf %26, %42 : vector<4x128xf32>
    %cst_20 = arith.constant -1.000000e+02 : f32
    %cst_21 = arith.constant 1.000000e+02 : f32
    %44 = vector.broadcast %cst_20 : f32 to vector<4x128xf32>
    %45 = arith.maximumf %44, %43 : vector<4x128xf32>
    %46 = vector.broadcast %cst_21 : f32 to vector<4x128xf32>
    %47 = arith.minimumf %46, %45 : vector<4x128xf32>
    %c0_22 = arith.constant 0 : index
    %c0_23 = arith.constant 0 : index
    %48 = vector.load %arg4[%c0_22, %c0_23] : memref<4x128xf32, #tpu.memory_space<vmem>>, vector<4x128xf32>
    tpu.vector_store %arg4[%c0_22, %c0_23], %47 {strides = array<i32>} : memref<4x128xf32, #tpu.memory_space<vmem>>, vector<4x128xf32>,
    return
  }
  func.func @transform_0(%arg0: i32) -> (i32, i32) {
    %c0_i32 = arith.constant 0 : i32
    %c0_i32_0 = arith.constant 0 : i32
    return %arg0, %c0_i32 : i32, i32
  }
  func.func @transform_1(%arg0: i32) -> (i32, i32) {
    %c0_i32 = arith.constant 0 : i32
    %c0_i32_0 = arith.constant 0 : i32
    %c0_i32_1 = arith.constant 0 : i32
    return %c0_i32, %c0_i32_0 : i32, i32
  }
  func.func @transform_2(%arg0: i32) -> (i32, i32) {
    %c0_i32 = arith.constant 0 : i32
    %c0_i32_0 = arith.constant 0 : i32
    %c0_i32_1 = arith.constant 0 : i32
    return %c0_i32, %c0_i32_0 : i32, i32
  }
  func.func @transform_3(%arg0: i32) -> (i32, i32) {
    %c0_i32 = arith.constant 0 : i32
    %c0_i32_0 = arith.constant 0 : i32
    return %arg0, %c0_i32 : i32, i32
  }
}

</mosaic_0001>

<llo_original>
// kernel: tpu_custom_call.1
$region0: #{tpu_custom_call.1}
  #allocation0 [shape = 'u32[]', space=smem, size = 0x4, offset = 0x4, fixed_abs, tag = 'smem constant byte address 0x4 - core index']
  #allocation1 [shape = 'u32[144,128]{1,0:T(1,128)}', space=vmem, size = 0x12000, scoped, tag = 'internal scratch']
  %s0 = inlined_call_operand.hbm [shape: f32[4,128], index: 0, kind: input, shape index: {}]
  %s1 = inlined_call_operand.hbm [shape: f32[4,128], index: 1, kind: input, shape index: {}]
  %s2 = inlined_call_operand.hbm [shape: f32[128,128], index: 2, kind: input, shape index: {}]
  %s3 = inlined_call_operand.hbm [shape: f32[4,128], index: 3, kind: output, shape index: {}]
  %s4 = sld [smem:[#allocation0]]
  $region34: #{tpu_custom_call.1} parent=0
    _
  %s6 = ssub.s32 1, %s4
  %s7 = scalar_select 0, %s6, %s4
  $region1: #{tpu_custom_call.1} parent=0
    #allocation2 [shape = 'u8[2048]{0}', space=vmem, size = 0x800, scoped, tag = 'input window, operand 0, single buffered']
    #allocation3 [shape = 's32[1]{0}', space=sflag, size = 0x4, scoped, tag = 'scoped memory for tpu_custom_call.1']
    #allocation4 [shape = 's32[1]{0}', space=sflag, size = 0x4, scoped, tag = 'scoped memory for tpu_custom_call.1']
    #allocation5 [shape = 'u8[2048]{0}', space=vmem, size = 0x800, scoped, tag = 'input window, operand 1, single buffered']
    #allocation6 [shape = 's32[1]{0}', space=sflag, size = 0x4, scoped, tag = 'scoped memory for tpu_custom_call.1']
    #allocation7 [shape = 'u8[65536]{0}', space=vmem, size = 0x10000, scoped, tag = 'input window, operand 2, single buffered']
    #allocation8 [shape = 'u8[2048]{0}', space=vmem, size = 0x800, scoped, tag = 'output window, operand 0, single buffered']
    %8 = vsyncpa [#allocation3], 0
    %9 = vsyncpa [#allocation6], 0
    %10 = vsyncpa [#allocation4], 0
    // Predicated region
    $region2: #{tpu_custom_call.1} parent=1 // pred_check
      _
    $region3: #{tpu_custom_call.1} parent=1 // pred_check_branch
      %12 = sbr.rel (0) target = $region5
    $region4: #{tpu_custom_call.1} parent=1 // pred_region
      %s14 = ssub.s32 64, 64
      %15 = vsyncadd [#allocation3], %s14
      %s17 = sshll.u32 [#allocation2], 4
      %s18 = int_to_ptr.vmem [resolvable:$true] %s17
      %20 = dma.hbm_to_vmem [thread:$0]  %s0, 64, %s18, [#allocation3]
    $region5: #{tpu_custom_call.1} parent=1 // pred_fallthru
      _
    // Predicated region
    $region6: #{tpu_custom_call.1} parent=1 // pred_check
      _
    $region7: #{tpu_custom_call.1} parent=1 // pred_check_branch
      %22 = sbr.rel (0) target = $region9
    $region8: #{tpu_custom_call.1} parent=1 // pred_region
      %s24 = ssub.s32 64, 64
      %25 = vsyncadd [#allocation6], %s24
      %s27 = sshll.u32 [#allocation5], 4
      %s28 = int_to_ptr.vmem [resolvable:$true] %s27
      %30 = dma.hbm_to_vmem [thread:$0]  %s1, 64, %s28, [#allocation6]
    $region9: #{tpu_custom_call.1} parent=1 // pred_fallthru
      _
    // Predicated region
    $region10: #{tpu_custom_call.1} parent=1 // pred_check
      _
    $region11: #{tpu_custom_call.1} parent=1 // pred_check_branch
      %32 = sbr.rel (0) target = $region13
    $region12: #{tpu_custom_call.1} parent=1 // pred_region
      %s34 = ssub.s32 2048, 2048
      %35 = vsyncadd [#allocation6], %s34
      %s36 = sshll.u32 [#allocation7], 4
      %s37 = int_to_ptr.vmem [resolvable:$true] %s36
      %42 = dma.hbm_to_vmem [thread:$0]  %s2, 2048, %s37, [#allocation6], 128, 128, 8
    $region13: #{tpu_custom_call.1} parent=1 // pred_fallthru
      _
    // Predicated region
    $region14: #{tpu_custom_call.1} parent=1 // pred_check
      _
    $region15: #{tpu_custom_call.1} parent=1 // pred_check_branch
      %44 = sbr.rel (0) target = $region17
    $region16: #{tpu_custom_call.1} parent=1 // pred_region
      %45 = dma.done [#allocation3], 64
    $region17: #{tpu_custom_call.1} parent=1 // pred_fallthru
      _
    // Predicated region
    $region18: #{tpu_custom_call.1} parent=1 // pred_check
      _
    $region19: #{tpu_custom_call.1} parent=1 // pred_check_branch
      %47 = sbr.rel (0) target = $region21
    $region20: #{tpu_custom_call.1} parent=1 // pred_region
      %48 = dma.done [#allocation6], 64
    $region21: #{tpu_custom_call.1} parent=1 // pred_fallthru
      _
    // Predicated region
    $region22: #{tpu_custom_call.1} parent=1 // pred_check
      _
    $region23: #{tpu_custom_call.1} parent=1 // pred_check_branch
      %50 = sbr.rel (0) target = $region25
    $region24: #{tpu_custom_call.1} parent=1 // pred_region
      %51 = dma.done [#allocation6], 2048
    $region25: #{tpu_custom_call.1} parent=1 // pred_fallthru
      _
    %v52 = vld [vmem:[#allocation2] sm:$0xf]
    %v53 = vld [vmem:[#allocation5] sm:$0x1]
    %v54 = vld [vmem:[#allocation5 + $0x1] sm:$0x1]
    %v55 = vld [vmem:[#allocation5 + $0x2] sm:$0x1]
    %v56 = vld [vmem:[#allocation5 + $0x3] sm:$0x1]
    %v57 = vld [vmem:[#allocation7] sm:$0xff]
    %v58 = vld [vmem:[#allocation7 + $0x8] sm:$0xff]
    %v59 = vld [vmem:[#allocation7 + $0x10] sm:$0xff]
    %v60 = vld [vmem:[#allocation7 + $0x18] sm:$0xff]
    %v61 = vld [vmem:[#allocation7 + $0x20] sm:$0xff]
    %v62 = vld [vmem:[#allocation7 + $0x28] sm:$0xff]
    %v63 = vld [vmem:[#allocation7 + $0x30] sm:$0xff]
    %v64 = vld [vmem:[#allocation7 + $0x38] sm:$0xff]
    %v65 = vld [vmem:[#allocation7 + $0x40] sm:$0xff]
    %v66 = vld [vmem:[#allocation7 + $0x48] sm:$0xff]
    %v67 = vld [vmem:[#allocation7 + $0x50] sm:$0xff]
    %v68 = vld [vmem:[#allocation7 + $0x58] sm:$0xff]
    %v69 = vld [vmem:[#allocation7 + $0x60] sm:$0xff]
    %v70 = vld [vmem:[#allocation7 + $0x68] sm:$0xff]
    %v71 = vld [vmem:[#allocation7 + $0x70] sm:$0xff]
    %v72 = vld [vmem:[#allocation7 + $0x78] sm:$0xff]
    %73 = vmatprep.subr.mxu0 0.0
    %v74 = vand.u32 %v57, 4294901760
    %75 = vmatpush1.msra.mxu0 %v74
    %76 = vmatprep.subr.mxu0 0.0
    %v77 = vand.u32 %v58, 4294901760
    %78 = vmatpush1.msra.mxu0 %v77
    %79 = vmatprep.subr.mxu0 0.0
    %v80 = vand.u32 %v59, 4294901760
    %81 = vmatpush1.msra.mxu0 %v80
    %82 = vmatprep.subr.mxu0 0.0
    %v83 = vand.u32 %v60, 4294901760
    %84 = vmatpush1.msra.mxu0 %v83
    %85 = vmatprep.subr.mxu0 0.0
    %v86 = vand.u32 %v61, 4294901760
    %87 = vmatpush1.msra.mxu0 %v86
    %88 = vmatprep.subr.mxu0 0.0
    %v89 = vand.u32 %v62, 4294901760
    %90 = vmatpush1.msra.mxu0 %v89
    %91 = vmatprep.subr.mxu0 0.0
    %v92 = vand.u32 %v63, 4294901760
    %93 = vmatpush1.msra.mxu0 %v92
    %94 = vmatprep.subr.mxu0 0.0
    %v95 = vand.u32 %v64, 4294901760
    %96 = vmatpush1.msra.mxu0 %v95
    %97 = vmatprep.subr.mxu0 0.0
    %v98 = vand.u32 %v65, 4294901760
    %99 = vmatpush1.msra.mxu0 %v98
    %100 = vmatprep.subr.mxu0 0.0
    %v101 = vand.u32 %v66, 4294901760
    %102 = vmatpush1.msra.mxu0 %v101
    %103 = vmatprep.subr.mxu0 0.0
    %v104 = vand.u32 %v67, 4294901760
    %105 = vmatpush1.msra.mxu0 %v104
    %106 = vmatprep.subr.mxu0 0.0
    %v107 = vand.u32 %v68, 4294901760
    %108 = vmatpush1.msra.mxu0 %v107
    %109 = vmatprep.subr.mxu0 0.0
    %v110 = vand.u32 %v69, 4294901760
    %111 = vmatpush1.msra.mxu0 %v110
    %112 = vmatprep.subr.mxu0 0.0
    %v113 = vand.u32 %v70, 4294901760
    %114 = vmatpush1.msra.mxu0 %v113
    %115 = vmatprep.subr.mxu0 0.0
    %v116 = vand.u32 %v71, 4294901760
    %117 = vmatpush1.msra.mxu0 %v116
    %118 = vmatprep.subr.mxu0 0.0
    %v119 = vand.u32 %v72, 4294901760
    %120 = vmatpush1.msra.mxu0 %v119
    %121 = vmatprep.subr.mxu0 0.0
    %122 = vmatpush1.msra.mxu0 0.0
    %123 = vmatprep.subr.mxu0 0.0
    %124 = vmatpush1.msra.mxu0 0.0
    %125 = vmatprep.subr.mxu0 0.0
    %126 = vmatpush1.msra.mxu0 0.0
    %127 = vmatprep.subr.mxu0 0.0
    %128 = vmatpush1.msra.mxu0 0.0
    %129 = vmatprep.subr.mxu0 0.0
    %130 = vmatpush1.msra.mxu0 0.0
    %131 = vmatprep.subr.mxu0 0.0
    %132 = vmatpush1.msra.mxu0 0.0
    %133 = vmatprep.subr.mxu0 0.0
    %134 = vmatpush1.msra.mxu0 0.0
    %135 = vmatprep.subr.mxu0 0.0
    %136 = vmatpush1.msra.mxu0 0.0
    %137 = vmatprep.subr.mxu0 0.0
    %138 = vmatpush1.msra.mxu0 0.0
    %139 = vmatprep.subr.mxu0 0.0
    %140 = vmatpush1.msra.mxu0 0.0
    %141 = vmatprep.subr.mxu0 0.0
    %142 = vmatpush1.msra.mxu0 0.0
    %143 = vmatprep.subr.mxu0 0.0
    %144 = vmatpush1.msra.mxu0 0.0
    %145 = vmatprep.subr.mxu0 0.0
    %146 = vmatpush1.msra.mxu0 0.0
    %147 = vmatprep.subr.mxu0 0.0
    %148 = vmatpush1.msra.mxu0 0.0
    %149 = vmatprep.subr.mxu0 0.0
    %150 = vmatpush1.msra.mxu0 0.0
    %151 = vmatprep.subr.mxu0 0.0
    %152 = vmatpush1.msra.mxu0 0.0
    %153 = vmatprep.mubr.f32.mxu0 0.0
    %v154 = vand.u32 %v52, 4294901760
    %v155 = vsub.f32 %v52, %v154
    %v156 = vand.u32 %v155, 4294901760
    %v157 = vsub.f32 %v155, %v156
    %v158 = vand.u32 %v157, 4294901760
    %159 = vmatmul.mubr.f32.gmra.mrb[0].mxu0 %v158
    %v160 = vpop.f32.mrb[0].mxu0
    %v161 = vadd.f32 0.0, %v160
    %v162 = vpop.f32.mrb[0].mxu0
    %163 = vdwg.mxu0
    %164 = vmatprep.subr.mxu0 0.0
    %v165 = vand.u32 %v57, 4294901760
    %v166 = vsub.f32 %v57, %v165
    %v167 = vand.u32 %v166, 4294901760
    %v168 = vsub.f32 %v166, %v167
    %v169 = vand.u32 %v168, 4294901760
    %170 = vmatpush1.msra.mxu0 %v169
    %171 = vmatprep.subr.mxu0 0.0
    %v172 = vand.u32 %v58, 4294901760
    %v173 = vsub.f32 %v58, %v172
    %v174 = vand.u32 %v173, 4294901760
    %v175 = vsub.f32 %v173, %v174
    %v176 = vand.u32 %v175, 4294901760
    %177 = vmatpush1.msra.mxu0 %v176
    %178 = vmatprep.subr.mxu0 0.0
    %v179 = vand.u32 %v59, 4294901760
    %v180 = vsub.f32 %v59, %v179
    %v181 = vand.u32 %v180, 4294901760
    %v182 = vsub.f32 %v180, %v181
    %v183 = vand.u32 %v182, 4294901760
    %184 = vmatpush1.msra.mxu0 %v183
    %185 = vmatprep.subr.mxu0 0.0
    %v186 = vand.u32 %v60, 4294901760
    %v187 = vsub.f32 %v60, %v186
    %v188 = vand.u32 %v187, 4294901760
    %v189 = vsub.f32 %v187, %v188
    %v190 = vand.u32 %v189, 4294901760
    %191 = vmatpush1.msra.mxu0 %v190
    %192 = vmatprep.subr.mxu0 0.0
    %v193 = vand.u32 %v61, 4294901760
    %v194 = vsub.f32 %v61, %v193
    %v195 = vand.u32 %v194, 4294901760
    %v196 = vsub.f32 %v194, %v195
    %v197 = vand.u32 %v196, 4294901760
    %198 = vmatpush1.msra.mxu0 %v197
    %199 = vmatprep.subr.mxu0 0.0
    %v200 = vand.u32 %v62, 4294901760
    %v201 = vsub.f32 %v62, %v200
    %v202 = vand.u32 %v201, 4294901760
    %v203 = vsub.f32 %v201, %v202
    %v204 = vand.u32 %v203, 4294901760
    %205 = vmatpush1.msra.mxu0 %v204
    %206 = vmatprep.subr.mxu0 0.0
    %v207 = vand.u32 %v63, 4294901760
    %v208 = vsub.f32 %v63, %v207
    %v209 = vand.u32 %v208, 4294901760
    %v210 = vsub.f32 %v208, %v209
    %v211 = vand.u32 %v210, 4294901760
    %212 = vmatpush1.msra.mxu0 %v211
    %213 = vmatprep.subr.mxu0 0.0
    %v214 = vand.u32 %v64, 4294901760
    %v215 = vsub.f32 %v64, %v214
    %v216 = vand.u32 %v215, 4294901760
    %v217 = vsub.f32 %v215, %v216
    %v218 = vand.u32 %v217, 4294901760
    %219 = vmatpush1.msra.mxu0 %v218
    %220 = vmatprep.subr.mxu0 0.0
    %v221 = vand.u32 %v65, 4294901760
    %v222 = vsub.f32 %v65, %v221
    %v223 = vand.u32 %v222, 4294901760
    %v224 = vsub.f32 %v222, %v223
    %v225 = vand.u32 %v224, 4294901760
    %226 = vmatpush1.msra.mxu0 %v225
    %227 = vmatprep.subr.mxu0 0.0
    %v228 = vand.u32 %v66, 4294901760
    %v229 = vsub.f32 %v66, %v228
    %v230 = vand.u32 %v229, 4294901760
    %v231 = vsub.f32 %v229, %v230
    %v232 = vand.u32 %v231, 4294901760
    %233 = vmatpush1.msra.mxu0 %v232
    %234 = vmatprep.subr.mxu0 0.0
    %v235 = vand.u32 %v67, 4294901760
    %v236 = vsub.f32 %v67, %v235
    %v237 = vand.u32 %v236, 4294901760
    %v238 = vsub.f32 %v236, %v237
    %v239 = vand.u32 %v238, 4294901760
    %240 = vmatpush1.msra.mxu0 %v239
    %241 = vmatprep.subr.mxu0 0.0
    %v242 = vand.u32 %v68, 4294901760
    %v243 = vsub.f32 %v68, %v242
    %v244 = vand.u32 %v243, 4294901760
    %v245 = vsub.f32 %v243, %v244
    %v246 = vand.u32 %v245, 4294901760
    %247 = vmatpush1.msra.mxu0 %v246
    %248 = vmatprep.subr.mxu0 0.0
    %v249 = vand.u32 %v69, 4294901760
    %v250 = vsub.f32 %v69, %v249
    %v251 = vand.u32 %v250, 4294901760
    %v252 = vsub.f32 %v250, %v251
    %v253 = vand.u32 %v252, 4294901760
    %254 = vmatpush1.msra.mxu0 %v253
    %255 = vmatprep.subr.mxu0 0.0
    %v256 = vand.u32 %v70, 4294901760
    %v257 = vsub.f32 %v70, %v256
    %v258 = vand.u32 %v257, 4294901760
    %v259 = vsub.f32 %v257, %v258
    %v260 = vand.u32 %v259, 4294901760
    %261 = vmatpush1.msra.mxu0 %v260
    %262 = vmatprep.subr.mxu0 0.0
    %v263 = vand.u32 %v71, 4294901760
    %v264 = vsub.f32 %v71, %v263
    %v265 = vand.u32 %v264, 4294901760
    %v266 = vsub.f32 %v264, %v265
    %v267 = vand.u32 %v266, 4294901760
    %268 = vmatpush1.msra.mxu0 %v267
    %269 = vmatprep.subr.mxu0 0.0
    %v270 = vand.u32 %v72, 4294901760
    %v271 = vsub.f32 %v72, %v270
    %v272 = vand.u32 %v271, 4294901760
    %v273 = vsub.f32 %v271, %v272
    %v274 = vand.u32 %v273, 4294901760
    %275 = vmatpush1.msra.mxu0 %v274
    %276 = vmatprep.subr.mxu0 0.0
    %277 = vmatpush1.msra.mxu0 0.0
    %278 = vmatprep.subr.mxu0 0.0
    %279 = vmatpush1.msra.mxu0 0.0
    %280 = vmatprep.subr.mxu0 0.0
    %281 = vmatpush1.msra.mxu0 0.0
    %282 = vmatprep.subr.mxu0 0.0
    %283 = vmatpush1.msra.mxu0 0.0
    %284 = vmatprep.subr.mxu0 0.0
    %285 = vmatpush1.msra.mxu0 0.0
    %286 = vmatprep.subr.mxu0 0.0
    %287 = vmatpush1.msra.mxu0 0.0
    %288 = vmatprep.subr.mxu0 0.0
    %289 = vmatpush1.msra.mxu0 0.0
    %290 = vmatprep.subr.mxu0 0.0
    %291 = vmatpush1.msra.mxu0 0.0
    %292 = vmatprep.subr.mxu0 0.0
    %293 = vmatpush1.msra.mxu0 0.0
    %294 = vmatprep.subr.mxu0 0.0
    %295 = vmatpush1.msra.mxu0 0.0
    %296 = vmatprep.subr.mxu0 0.0
    %297 = vmatpush1.msra.mxu0 0.0
    %298 = vmatprep.subr.mxu0 0.0
    %299 = vmatpush1.msra.mxu0 0.0
    %300 = vmatprep.subr.mxu0 0.0
    %301 = vmatpush1.msra.mxu0 0.0
    %302 = vmatprep.subr.mxu0 0.0
    %303 = vmatpush1.msra.mxu0 0.0
    %304 = vmatprep.subr.mxu0 0.0
    %305 = vmatpush1.msra.mxu0 0.0
    %306 = vmatprep.subr.mxu0 0.0
    %307 = vmatpush1.msra.mxu0 0.0
    %308 = vmatprep.mubr.f32.mxu0 0.0
    %v309 = vand.u32 %v52, 4294901760
    %310 = vmatmul.mubr.f32.gmra.mrb[0].mxu0 %v309
    %v311 = vpop.f32.mrb[0].mxu0
    %v312 = vadd.f32 %v161, %v311
    %v313 = vpop.f32.mrb[0].mxu0
    %314 = vdwg.mxu0
    %315 = vmatprep.subr.mxu0 0.0
    %v316 = vand.u32 %v57, 4294901760
    %v317 = vsub.f32 %v57, %v316
    %318 = vmatpush1.msra.mxu0 %v317
    %319 = vmatprep.subr.mxu0 0.0
    %v320 = vand.u32 %v58, 4294901760
    %v321 = vsub.f32 %v58, %v320
    %322 = vmatpush1.msra.mxu0 %v321
    %323 = vmatprep.subr.mxu0 0.0
    %v324 = vand.u32 %v59, 4294901760
    %v325 = vsub.f32 %v59, %v324
    %326 = vmatpush1.msra.mxu0 %v325
    %327 = vmatprep.subr.mxu0 0.0
    %v328 = vand.u32 %v60, 4294901760
    %v329 = vsub.f32 %v60, %v328
    %330 = vmatpush1.msra.mxu0 %v329
    %331 = vmatprep.subr.mxu0 0.0
    %v332 = vand.u32 %v61, 4294901760
    %v333 = vsub.f32 %v61, %v332
    %334 = vmatpush1.msra.mxu0 %v333
    %335 = vmatprep.subr.mxu0 0.0
    %v336 = vand.u32 %v62, 4294901760
    %v337 = vsub.f32 %v62, %v336
    %338 = vmatpush1.msra.mxu0 %v337
    %339 = vmatprep.subr.mxu0 0.0
    %v340 = vand.u32 %v63, 4294901760
    %v341 = vsub.f32 %v63, %v340
    %342 = vmatpush1.msra.mxu0 %v341
    %343 = vmatprep.subr.mxu0 0.0
    %v344 = vand.u32 %v64, 4294901760
    %v345 = vsub.f32 %v64, %v344
    %346 = vmatpush1.msra.mxu0 %v345
    %347 = vmatprep.subr.mxu0 0.0
    %v348 = vand.u32 %v65, 4294901760
    %v349 = vsub.f32 %v65, %v348
    %350 = vmatpush1.msra.mxu0 %v349
    %351 = vmatprep.subr.mxu0 0.0
    %v352 = vand.u32 %v66, 4294901760
    %v353 = vsub.f32 %v66, %v352
    %354 = vmatpush1.msra.mxu0 %v353
    %355 = vmatprep.subr.mxu0 0.0
    %v356 = vand.u32 %v67, 4294901760
    %v357 = vsub.f32 %v67, %v356
    %358 = vmatpush1.msra.mxu0 %v357
    %359 = vmatprep.subr.mxu0 0.0
    %v360 = vand.u32 %v68, 4294901760
    %v361 = vsub.f32 %v68, %v360
    %362 = vmatpush1.msra.mxu0 %v361
    %363 = vmatprep.subr.mxu0 0.0
    %v364 = vand.u32 %v69, 4294901760
    %v365 = vsub.f32 %v69, %v364
    %366 = vmatpush1.msra.mxu0 %v365
    %367 = vmatprep.subr.mxu0 0.0
    %v368 = vand.u32 %v70, 4294901760
    %v369 = vsub.f32 %v70, %v368
    %370 = vmatpush1.msra.mxu0 %v369
    %371 = vmatprep.subr.mxu0 0.0
    %v372 = vand.u32 %v71, 4294901760
    %v373 = vsub.f32 %v71, %v372
    %374 = vmatpush1.msra.mxu0 %v373
    %375 = vmatprep.subr.mxu0 0.0
    %v376 = vand.u32 %v72, 4294901760
    %v377 = vsub.f32 %v72, %v376
    %378 = vmatpush1.msra.mxu0 %v377
    %379 = vmatprep.subr.mxu0 0.0
    %380 = vmatpush1.msra.mxu0 0.0
    %381 = vmatprep.subr.mxu0 0.0
    %382 = vmatpush1.msra.mxu0 0.0
    %383 = vmatprep.subr.mxu0 0.0
    %384 = vmatpush1.msra.mxu0 0.0
    %385 = vmatprep.subr.mxu0 0.0
    %386 = vmatpush1.msra.mxu0 0.0
    %387 = vmatprep.subr.mxu0 0.0
    %388 = vmatpush1.msra.mxu0 0.0
    %389 = vmatprep.subr.mxu0 0.0
    %390 = vmatpush1.msra.mxu0 0.0
    %391 = vmatprep.subr.mxu0 0.0
    %392 = vmatpush1.msra.mxu0 0.0
    %393 = vmatprep.subr.mxu0 0.0
    %394 = vmatpush1.msra.mxu0 0.0
    %395 = vmatprep.subr.mxu0 0.0
    %396 = vmatpush1.msra.mxu0 0.0
    %397 = vmatprep.subr.mxu0 0.0
    %398 = vmatpush1.msra.mxu0 0.0
    %399 = vmatprep.subr.mxu0 0.0
    %400 = vmatpush1.msra.mxu0 0.0
    %401 = vmatprep.subr.mxu0 0.0
    %402 = vmatpush1.msra.mxu0 0.0
    %403 = vmatprep.subr.mxu0 0.0
    %404 = vmatpush1.msra.mxu0 0.0
    %405 = vmatprep.subr.mxu0 0.0
    %406 = vmatpush1.msra.mxu0 0.0
    %407 = vmatprep.subr.mxu0 0.0
    %408 = vmatpush1.msra.mxu0 0.0
    %409 = vmatprep.subr.mxu0 0.0
    %410 = vmatpush1.msra.mxu0 0.0
    %411 = vmatprep.mubr.f32.mxu0 0.0
    %v412 = vand.u32 %v52, 4294901760
    %v413 = vsub.f32 %v52, %v412
    %414 = vmatmul.mubr.f32.gmra.mrb[0].mxu0 %v413
    %v415 = vpop.f32.mrb[0].mxu0
    %v416 = vadd.f32 %v312, %v415
    %v417 = vpop.f32.mrb[0].mxu0
    %418 = vdwg.mxu0
    %419 = vmatprep.subr.mxu0 0.0
    %v420 = vand.u32 %v57, 4294901760
    %421 = vmatpush1.msra.mxu0 %v420
    %422 = vmatprep.subr.mxu0 0.0
    %v423 = vand.u32 %v58, 4294901760
    %424 = vmatpush1.msra.mxu0 %v423
    %425 = vmatprep.subr.mxu0 0.0
    %v426 = vand.u32 %v59, 4294901760
    %427 = vmatpush1.msra.mxu0 %v426
    %428 = vmatprep.subr.mxu0 0.0
    %v429 = vand.u32 %v60, 4294901760
    %430 = vmatpush1.msra.mxu0 %v429
    %431 = vmatprep.subr.mxu0 0.0
    %v432 = vand.u32 %v61, 4294901760
    %433 = vmatpush1.msra.mxu0 %v432
    %434 = vmatprep.subr.mxu0 0.0
    %v435 = vand.u32 %v62, 4294901760
    %436 = vmatpush1.msra.mxu0 %v435
    %437 = vmatprep.subr.mxu0 0.0
    %v438 = vand.u32 %v63, 4294901760
    %439 = vmatpush1.msra.mxu0 %v438
    %440 = vmatprep.subr.mxu0 0.0
    %v441 = vand.u32 %v64, 4294901760
    %442 = vmatpush1.msra.mxu0 %v441
    %443 = vmatprep.subr.mxu0 0.0
    %v444 = vand.u32 %v65, 4294901760
    %445 = vmatpush1.msra.mxu0 %v444
    %446 = vmatprep.subr.mxu0 0.0
    %v447 = vand.u32 %v66, 4294901760
    %448 = vmatpush1.msra.mxu0 %v447
    %449 = vmatprep.subr.mxu0 0.0
    %v450 = vand.u32 %v67, 4294901760
    %451 = vmatpush1.msra.mxu0 %v450
    %452 = vmatprep.subr.mxu0 0.0
    %v453 = vand.u32 %v68, 4294901760
    %454 = vmatpush1.msra.mxu0 %v453
    %455 = vmatprep.subr.mxu0 0.0
    %v456 = vand.u32 %v69, 4294901760
    %457 = vmatpush1.msra.mxu0 %v456
    %458 = vmatprep.subr.mxu0 0.0
    %v459 = vand.u32 %v70, 4294901760
    %460 = vmatpush1.msra.mxu0 %v459
    %461 = vmatprep.subr.mxu0 0.0
    %v462 = vand.u32 %v71, 4294901760
    %463 = vmatpush1.msra.mxu0 %v462
    %464 = vmatprep.subr.mxu0 0.0
    %v465 = vand.u32 %v72, 4294901760
    %466 = vmatpush1.msra.mxu0 %v465
    %467 = vmatprep.subr.mxu0 0.0
    %468 = vmatpush1.msra.mxu0 0.0
    %469 = vmatprep.subr.mxu0 0.0
    %470 = vmatpush1.msra.mxu0 0.0
    %471 = vmatprep.subr.mxu0 0.0
    %472 = vmatpush1.msra.mxu0 0.0
    %473 = vmatprep.subr.mxu0 0.0
    %474 = vmatpush1.msra.mxu0 0.0
    %475 = vmatprep.subr.mxu0 0.0
    %476 = vmatpush1.msra.mxu0 0.0
    %477 = vmatprep.subr.mxu0 0.0
    %478 = vmatpush1.msra.mxu0 0.0
    %479 = vmatprep.subr.mxu0 0.0
    %480 = vmatpush1.msra.mxu0 0.0
    %481 = vmatprep.subr.mxu0 0.0
    %482 = vmatpush1.msra.mxu0 0.0
    %483 = vmatprep.subr.mxu0 0.0
    %484 = vmatpush1.msra.mxu0 0.0
    %485 = vmatprep.subr.mxu0 0.0
    %486 = vmatpush1.msra.mxu0 0.0
    %487 = vmatprep.subr.mxu0 0.0
    %488 = vmatpush1.msra.mxu0 0.0
    %489 = vmatprep.subr.mxu0 0.0
    %490 = vmatpush1.msra.mxu0 0.0
    %491 = vmatprep.subr.mxu0 0.0
    %492 = vmatpush1.msra.mxu0 0.0
    %493 = vmatprep.subr.mxu0 0.0
    %494 = vmatpush1.msra.mxu0 0.0
    %495 = vmatprep.subr.mxu0 0.0
    %496 = vmatpush1.msra.mxu0 0.0
    %497 = vmatprep.subr.mxu0 0.0
    %498 = vmatpush1.msra.mxu0 0.0
    %499 = vmatprep.mubr.f32.mxu0 0.0
    %v500 = vand.u32 %v52, 4294901760
    %v501 = vsub.f32 %v52, %v500
    %v502 = vand.u32 %v501, 4294901760
    %503 = vmatmul.mubr.f32.gmra.mrb[0].mxu0 %v502
    %v504 = vpop.f32.mrb[0].mxu0
    %v505 = vadd.f32 %v416, %v504
    %v506 = vpop.f32.mrb[0].mxu0
    %507 = vdwg.mxu0
    %508 = vmatprep.subr.mxu0 0.0
    %v509 = vand.u32 %v57, 4294901760
    %v510 = vsub.f32 %v57, %v509
    %v511 = vand.u32 %v510, 4294901760
    %512 = vmatpush1.msra.mxu0 %v511
    %513 = vmatprep.subr.mxu0 0.0
    %v514 = vand.u32 %v58, 4294901760
    %v515 = vsub.f32 %v58, %v514
    %v516 = vand.u32 %v515, 4294901760
    %517 = vmatpush1.msra.mxu0 %v516
    %518 = vmatprep.subr.mxu0 0.0
    %v519 = vand.u32 %v59, 4294901760
    %v520 = vsub.f32 %v59, %v519
    %v521 = vand.u32 %v520, 4294901760
    %522 = vmatpush1.msra.mxu0 %v521
    %523 = vmatprep.subr.mxu0 0.0
    %v524 = vand.u32 %v60, 4294901760
    %v525 = vsub.f32 %v60, %v524
    %v526 = vand.u32 %v525, 4294901760
    %527 = vmatpush1.msra.mxu0 %v526
    %528 = vmatprep.subr.mxu0 0.0
    %v529 = vand.u32 %v61, 4294901760
    %v530 = vsub.f32 %v61, %v529
    %v531 = vand.u32 %v530, 4294901760
    %532 = vmatpush1.msra.mxu0 %v531
    %533 = vmatprep.subr.mxu0 0.0
    %v534 = vand.u32 %v62, 4294901760
    %v535 = vsub.f32 %v62, %v534
    %v536 = vand.u32 %v535, 4294901760
    %537 = vmatpush1.msra.mxu0 %v536
    %538 = vmatprep.subr.mxu0 0.0
    %v539 = vand.u32 %v63, 4294901760
    %v540 = vsub.f32 %v63, %v539
    %v541 = vand.u32 %v540, 4294901760
    %542 = vmatpush1.msra.mxu0 %v541
    %543 = vmatprep.subr.mxu0 0.0
    %v544 = vand.u32 %v64, 4294901760
    %v545 = vsub.f32 %v64, %v544
    %v546 = vand.u32 %v545, 4294901760
    %547 = vmatpush1.msra.mxu0 %v546
    %548 = vmatprep.subr.mxu0 0.0
    %v549 = vand.u32 %v65, 4294901760
    %v550 = vsub.f32 %v65, %v549
    %v551 = vand.u32 %v550, 4294901760
    %552 = vmatpush1.msra.mxu0 %v551
    %553 = vmatprep.subr.mxu0 0.0
    %v554 = vand.u32 %v66, 4294901760
    %v555 = vsub.f32 %v66, %v554
    %v556 = vand.u32 %v555, 4294901760
    %557 = vmatpush1.msra.mxu0 %v556
    %558 = vmatprep.subr.mxu0 0.0
    %v559 = vand.u32 %v67, 4294901760
    %v560 = vsub.f32 %v67, %v559
    %v561 = vand.u32 %v560, 4294901760
    %562 = vmatpush1.msra.mxu0 %v561
    %563 = vmatprep.subr.mxu0 0.0
    %v564 = vand.u32 %v68, 4294901760
    %v565 = vsub.f32 %v68, %v564
    %v566 = vand.u32 %v565, 4294901760
    %567 = vmatpush1.msra.mxu0 %v566
    %568 = vmatprep.subr.mxu0 0.0
    %v569 = vand.u32 %v69, 4294901760
    %v570 = vsub.f32 %v69, %v569
    %v571 = vand.u32 %v570, 4294901760
    %572 = vmatpush1.msra.mxu0 %v571
    %573 = vmatprep.subr.mxu0 0.0
    %v574 = vand.u32 %v70, 4294901760
    %v575 = vsub.f32 %v70, %v574
    %v576 = vand.u32 %v575, 4294901760
    %577 = vmatpush1.msra.mxu0 %v576
    %578 = vmatprep.subr.mxu0 0.0
    %v579 = vand.u32 %v71, 4294901760
    %v580 = vsub.f32 %v71, %v579
    %v581 = vand.u32 %v580, 4294901760
    %582 = vmatpush1.msra.mxu0 %v581
    %583 = vmatprep.subr.mxu0 0.0
    %v584 = vand.u32 %v72, 4294901760
    %v585 = vsub.f32 %v72, %v584
    %v586 = vand.u32 %v585, 4294901760
    %587 = vmatpush1.msra.mxu0 %v586
    %588 = vmatprep.subr.mxu0 0.0
    %589 = vmatpush1.msra.mxu0 0.0
    %590 = vmatprep.subr.mxu0 0.0
    %591 = vmatpush1.msra.mxu0 0.0
    %592 = vmatprep.subr.mxu0 0.0
    %593 = vmatpush1.msra.mxu0 0.0
    %594 = vmatprep.subr.mxu0 0.0
    %595 = vmatpush1.msra.mxu0 0.0
    %596 = vmatprep.subr.mxu0 0.0
    %597 = vmatpush1.msra.mxu0 0.0
    %598 = vmatprep.subr.mxu0 0.0
    %599 = vmatpush1.msra.mxu0 0.0
    %600 = vmatprep.subr.mxu0 0.0
    %601 = vmatpush1.msra.mxu0 0.0
    %602 = vmatprep.subr.mxu0 0.0
    %603 = vmatpush1.msra.mxu0 0.0
    %604 = vmatprep.subr.mxu0 0.0
    %605 = vmatpush1.msra.mxu0 0.0
    %606 = vmatprep.subr.mxu0 0.0
    %607 = vmatpush1.msra.mxu0 0.0
    %608 = vmatprep.subr.mxu0 0.0
    %609 = vmatpush1.msra.mxu0 0.0
    %610 = vmatprep.subr.mxu0 0.0
    %611 = vmatpush1.msra.mxu0 0.0
    %612 = vmatprep.subr.mxu0 0.0
    %613 = vmatpush1.msra.mxu0 0.0
    %614 = vmatprep.subr.mxu0 0.0
    %615 = vmatpush1.msra.mxu0 0.0
    %616 = vmatprep.subr.mxu0 0.0
    %617 = vmatpush1.msra.mxu0 0.0
    %618 = vmatprep.subr.mxu0 0.0
    %619 = vmatpush1.msra.mxu0 0.0
    %620 = vmatprep.mubr.f32.mxu0 0.0
    %v621 = vand.u32 %v52, 4294901760
    %622 = vmatmul.mubr.f32.gmra.mrb[0].mxu0 %v621
    %v623 = vpop.f32.mrb[0].mxu0
    %v624 = vadd.f32 %v505, %v623
    %v625 = vpop.f32.mrb[0].mxu0
    %626 = vdwg.mxu0
    %627 = vmatprep.subr.mxu0 0.0
    %v628 = vand.u32 %v57, 4294901760
    %629 = vmatpush1.msra.mxu0 %v628
    %630 = vmatprep.subr.mxu0 0.0
    %v631 = vand.u32 %v58, 4294901760
    %632 = vmatpush1.msra.mxu0 %v631
    %633 = vmatprep.subr.mxu0 0.0
    %v634 = vand.u32 %v59, 4294901760
    %635 = vmatpush1.msra.mxu0 %v634
    %636 = vmatprep.subr.mxu0 0.0
    %v637 = vand.u32 %v60, 4294901760
    %638 = vmatpush1.msra.mxu0 %v637
    %639 = vmatprep.subr.mxu0 0.0
    %v640 = vand.u32 %v61, 4294901760
    %641 = vmatpush1.msra.mxu0 %v640
    %642 = vmatprep.subr.mxu0 0.0
    %v643 = vand.u32 %v62, 4294901760
    %644 = vmatpush1.msra.mxu0 %v643
    %645 = vmatprep.subr.mxu0 0.0
    %v646 = vand.u32 %v63, 4294901760
    %647 = vmatpush1.msra.mxu0 %v646
    %648 = vmatprep.subr.mxu0 0.0
    %v649 = vand.u32 %v64, 4294901760
    %650 = vmatpush1.msra.mxu0 %v649
    %651 = vmatprep.subr.mxu0 0.0
    %v652 = vand.u32 %v65, 4294901760
    %653 = vmatpush1.msra.mxu0 %v652
    %654 = vmatprep.subr.mxu0 0.0
    %v655 = vand.u32 %v66, 4294901760
    %656 = vmatpush1.msra.mxu0 %v655
    %657 = vmatprep.subr.mxu0 0.0
    %v658 = vand.u32 %v67, 4294901760
    %659 = vmatpush1.msra.mxu0 %v658
    %660 = vmatprep.subr.mxu0 0.0
    %v661 = vand.u32 %v68, 4294901760
    %662 = vmatpush1.msra.mxu0 %v661
    %663 = vmatprep.subr.mxu0 0.0
    %v664 = vand.u32 %v69, 4294901760
    %665 = vmatpush1.msra.mxu0 %v664
    %666 = vmatprep.subr.mxu0 0.0
    %v667 = vand.u32 %v70, 4294901760
    %668 = vmatpush1.msra.mxu0 %v667
    %669 = vmatprep.subr.mxu0 0.0
    %v670 = vand.u32 %v71, 4294901760
    %671 = vmatpush1.msra.mxu0 %v670
    %672 = vmatprep.subr.mxu0 0.0
    %v673 = vand.u32 %v72, 4294901760
    %674 = vmatpush1.msra.mxu0 %v673
    %675 = vmatprep.subr.mxu0 0.0
    %676 = vmatpush1.msra.mxu0 0.0
    %677 = vmatprep.subr.mxu0 0.0
    %678 = vmatpush1.msra.mxu0 0.0
    %679 = vmatprep.subr.mxu0 0.0
    %680 = vmatpush1.msra.mxu0 0.0
    %681 = vmatprep.subr.mxu0 0.0
    %682 = vmatpush1.msra.mxu0 0.0
    %683 = vmatprep.subr.mxu0 0.0
    %684 = vmatpush1.msra.mxu0 0.0
    %685 = vmatprep.subr.mxu0 0.0
    %686 = vmatpush1.msra.mxu0 0.0
    %687 = vmatprep.subr.mxu0 0.0
    %688 = vmatpush1.msra.mxu0 0.0
    %689 = vmatprep.subr.mxu0 0.0
    %690 = vmatpush1.msra.mxu0 0.0
    %691 = vmatprep.subr.mxu0 0.0
    %692 = vmatpush1.msra.mxu0 0.0
    %693 = vmatprep.subr.mxu0 0.0
    %694 = vmatpush1.msra.mxu0 0.0
    %695 = vmatprep.subr.mxu0 0.0
    %696 = vmatpush1.msra.mxu0 0.0
    %697 = vmatprep.subr.mxu0 0.0
    %698 = vmatpush1.msra.mxu0 0.0
    %699 = vmatprep.subr.mxu0 0.0
    %700 = vmatpush1.msra.mxu0 0.0
    %701 = vmatprep.subr.mxu0 0.0
    %702 = vmatpush1.msra.mxu0 0.0
    %703 = vmatprep.subr.mxu0 0.0
    %704 = vmatpush1.msra.mxu0 0.0
    %705 = vmatprep.subr.mxu0 0.0
    %706 = vmatpush1.msra.mxu0 0.0
    %707 = vmatprep.mubr.f32.mxu0 0.0
    %v708 = vand.u32 %v52, 4294901760
    %709 = vmatmul.mubr.f32.gmra.mrb[0].mxu0 %v708
    %v710 = vpop.f32.mrb[0].mxu0
    %v711 = vadd.f32 %v624, %v710
    %v712 = vpop.f32.mrb[0].mxu0
    %713 = vdwg.mxu0
    %v714 = vmul.f32 %v52, %v52
    %715 = vmatprep.subr.mxu0 0.0
    %v716 = vand.u32 %v57, 4294901760
    %717 = vmatpush1.msra.mxu0 %v716
    %718 = vmatprep.subr.mxu0 0.0
    %v719 = vand.u32 %v58, 4294901760
    %720 = vmatpush1.msra.mxu0 %v719
    %721 = vmatprep.subr.mxu0 0.0
    %v722 = vand.u32 %v59, 4294901760
    %723 = vmatpush1.msra.mxu0 %v722
    %724 = vmatprep.subr.mxu0 0.0
    %v725 = vand.u32 %v60, 4294901760
    %726 = vmatpush1.msra.mxu0 %v725
    %727 = vmatprep.subr.mxu0 0.0
    %v728 = vand.u32 %v61, 4294901760
    %729 = vmatpush1.msra.mxu0 %v728
    %730 = vmatprep.subr.mxu0 0.0
    %v731 = vand.u32 %v62, 4294901760
    %732 = vmatpush1.msra.mxu0 %v731
    %733 = vmatprep.subr.mxu0 0.0
    %v734 = vand.u32 %v63, 4294901760
    %735 = vmatpush1.msra.mxu0 %v734
    %736 = vmatprep.subr.mxu0 0.0
    %v737 = vand.u32 %v64, 4294901760
    %738 = vmatpush1.msra.mxu0 %v737
    %739 = vmatprep.subr.mxu0 0.0
    %v740 = vand.u32 %v65, 4294901760
    %741 = vmatpush1.msra.mxu0 %v740
    %742 = vmatprep.subr.mxu0 0.0
    %v743 = vand.u32 %v66, 4294901760
    %744 = vmatpush1.msra.mxu0 %v743
    %745 = vmatprep.subr.mxu0 0.0
    %v746 = vand.u32 %v67, 4294901760
    %747 = vmatpush1.msra.mxu0 %v746
    %748 = vmatprep.subr.mxu0 0.0
    %v749 = vand.u32 %v68, 4294901760
    %750 = vmatpush1.msra.mxu0 %v749
    %751 = vmatprep.subr.mxu0 0.0
    %v752 = vand.u32 %v69, 4294901760
    %753 = vmatpush1.msra.mxu0 %v752
    %754 = vmatprep.subr.mxu0 0.0
    %v755 = vand.u32 %v70, 4294901760
    %756 = vmatpush1.msra.mxu0 %v755
    %757 = vmatprep.subr.mxu0 0.0
    %v758 = vand.u32 %v71, 4294901760
    %759 = vmatpush1.msra.mxu0 %v758
    %760 = vmatprep.subr.mxu0 0.0
    %v761 = vand.u32 %v72, 4294901760
    %762 = vmatpush1.msra.mxu0 %v761
    %763 = vmatprep.subr.mxu0 0.0
    %764 = vmatpush1.msra.mxu0 0.0
    %765 = vmatprep.subr.mxu0 0.0
    %766 = vmatpush1.msra.mxu0 0.0
    %767 = vmatprep.subr.mxu0 0.0
    %768 = vmatpush1.msra.mxu0 0.0
    %769 = vmatprep.subr.mxu0 0.0
    %770 = vmatpush1.msra.mxu0 0.0
    %771 = vmatprep.subr.mxu0 0.0
    %772 = vmatpush1.msra.mxu0 0.0
    %773 = vmatprep.subr.mxu0 0.0
    %774 = vmatpush1.msra.mxu0 0.0
    %775 = vmatprep.subr.mxu0 0.0
    %776 = vmatpush1.msra.mxu0 0.0
    %777 = vmatprep.subr.mxu0 0.0
    %778 = vmatpush1.msra.mxu0 0.0
    %779 = vmatprep.subr.mxu0 0.0
    %780 = vmatpush1.msra.mxu0 0.0
    %781 = vmatprep.subr.mxu0 0.0
    %782 = vmatpush1.msra.mxu0 0.0
    %783 = vmatprep.subr.mxu0 0.0
    %784 = vmatpush1.msra.mxu0 0.0
    %785 = vmatprep.subr.mxu0 0.0
    %786 = vmatpush1.msra.mxu0 0.0
    %787 = vmatprep.subr.mxu0 0.0
    %788 = vmatpush1.msra.mxu0 0.0
    %789 = vmatprep.subr.mxu0 0.0
    %790 = vmatpush1.msra.mxu0 0.0
    %791 = vmatprep.subr.mxu0 0.0
    %792 = vmatpush1.msra.mxu0 0.0
    %793 = vmatprep.subr.mxu0 0.0
    %794 = vmatpush1.msra.mxu0 0.0
    %795 = vmatprep.mubr.f32.mxu0 0.0
    %v796 = vand.u32 %v714, 4294901760
    %v797 = vsub.f32 %v714, %v796
    %v798 = vand.u32 %v797, 4294901760
    %v799 = vsub.f32 %v797, %v798
    %v800 = vand.u32 %v799, 4294901760
    %801 = vmatmul.mubr.f32.gmra.mrb[0].mxu0 %v800
    %v802 = vpop.f32.mrb[0].mxu0
    %v803 = vadd.f32 0.0, %v802
    %v804 = vpop.f32.mrb[0].mxu0
    %805 = vdwg.mxu0
    %806 = vmatprep.subr.mxu0 0.0
    %v807 = vand.u32 %v57, 4294901760
    %v808 = vsub.f32 %v57, %v807
    %v809 = vand.u32 %v808, 4294901760
    %v810 = vsub.f32 %v808, %v809
    %v811 = vand.u32 %v810, 4294901760
    %812 = vmatpush1.msra.mxu0 %v811
    %813 = vmatprep.subr.mxu0 0.0
    %v814 = vand.u32 %v58, 4294901760
    %v815 = vsub.f32 %v58, %v814
    %v816 = vand.u32 %v815, 4294901760
    %v817 = vsub.f32 %v815, %v816
    %v818 = vand.u32 %v817, 4294901760
    %819 = vmatpush1.msra.mxu0 %v818
    %820 = vmatprep.subr.mxu0 0.0
    %v821 = vand.u32 %v59, 4294901760
    %v822 = vsub.f32 %v59, %v821
    %v823 = vand.u32 %v822, 4294901760
    %v824 = vsub.f32 %v822, %v823
    %v825 = vand.u32 %v824, 4294901760
    %826 = vmatpush1.msra.mxu0 %v825
    %827 = vmatprep.subr.mxu0 0.0
    %v828 = vand.u32 %v60, 4294901760
    %v829 = vsub.f32 %v60, %v828
    %v830 = vand.u32 %v829, 4294901760
    %v831 = vsub.f32 %v829, %v830
    %v832 = vand.u32 %v831, 4294901760
    %833 = vmatpush1.msra.mxu0 %v832
    %834 = vmatprep.subr.mxu0 0.0
    %v835 = vand.u32 %v61, 4294901760
    %v836 = vsub.f32 %v61, %v835
    %v837 = vand.u32 %v836, 4294901760
    %v838 = vsub.f32 %v836, %v837
    %v839 = vand.u32 %v838, 4294901760
    %840 = vmatpush1.msra.mxu0 %v839
    %841 = vmatprep.subr.mxu0 0.0
    %v842 = vand.u32 %v62, 4294901760
    %v843 = vsub.f32 %v62, %v842
    %v844 = vand.u32 %v843, 4294901760
    %v845 = vsub.f32 %v843, %v844
    %v846 = vand.u32 %v845, 4294901760
    %847 = vmatpush1.msra.mxu0 %v846
    %848 = vmatprep.subr.mxu0 0.0
    %v849 = vand.u32 %v63, 4294901760
    %v850 = vsub.f32 %v63, %v849
    %v851 = vand.u32 %v850, 4294901760
    %v852 = vsub.f32 %v850, %v851
    %v853 = vand.u32 %v852, 4294901760
    %854 = vmatpush1.msra.mxu0 %v853
    %855 = vmatprep.subr.mxu0 0.0
    %v856 = vand.u32 %v64, 4294901760
    %v857 = vsub.f32 %v64, %v856
    %v858 = vand.u32 %v857, 4294901760
    %v859 = vsub.f32 %v857, %v858
    %v860 = vand.u32 %v859, 4294901760
    %861 = vmatpush1.msra.mxu0 %v860
    %862 = vmatprep.subr.mxu0 0.0
    %v863 = vand.u32 %v65, 4294901760
    %v864 = vsub.f32 %v65, %v863
    %v865 = vand.u32 %v864, 4294901760
    %v866 = vsub.f32 %v864, %v865
    %v867 = vand.u32 %v866, 4294901760
    %868 = vmatpush1.msra.mxu0 %v867
    %869 = vmatprep.subr.mxu0 0.0
    %v870 = vand.u32 %v66, 4294901760
    %v871 = vsub.f32 %v66, %v870
    %v872 = vand.u32 %v871, 4294901760
    %v873 = vsub.f32 %v871, %v872
    %v874 = vand.u32 %v873, 4294901760
    %875 = vmatpush1.msra.mxu0 %v874
    %876 = vmatprep.subr.mxu0 0.0
    %v877 = vand.u32 %v67, 4294901760
    %v878 = vsub.f32 %v67, %v877
    %v879 = vand.u32 %v878, 4294901760
    %v880 = vsub.f32 %v878, %v879
    %v881 = vand.u32 %v880, 4294901760
    %882 = vmatpush1.msra.mxu0 %v881
    %883 = vmatprep.subr.mxu0 0.0
    %v884 = vand.u32 %v68, 4294901760
    %v885 = vsub.f32 %v68, %v884
    %v886 = vand.u32 %v885, 4294901760
    %v887 = vsub.f32 %v885, %v886
    %v888 = vand.u32 %v887, 4294901760
    %889 = vmatpush1.msra.mxu0 %v888
    %890 = vmatprep.subr.mxu0 0.0
    %v891 = vand.u32 %v69, 4294901760
    %v892 = vsub.f32 %v69, %v891
    %v893 = vand.u32 %v892, 4294901760
    %v894 = vsub.f32 %v892, %v893
    %v895 = vand.u32 %v894, 4294901760
    %896 = vmatpush1.msra.mxu0 %v895
    %897 = vmatprep.subr.mxu0 0.0
    %v898 = vand.u32 %v70, 4294901760
    %v899 = vsub.f32 %v70, %v898
    %v900 = vand.u32 %v899, 4294901760
    %v901 = vsub.f32 %v899, %v900
    %v902 = vand.u32 %v901, 4294901760
    %903 = vmatpush1.msra.mxu0 %v902
    %904 = vmatprep.subr.mxu0 0.0
    %v905 = vand.u32 %v71, 4294901760
    %v906 = vsub.f32 %v71, %v905
    %v907 = vand.u32 %v906, 4294901760
    %v908 = vsub.f32 %v906, %v907
    %v909 = vand.u32 %v908, 4294901760
    %910 = vmatpush1.msra.mxu0 %v909
    %911 = vmatprep.subr.mxu0 0.0
    %v912 = vand.u32 %v72, 4294901760
    %v913 = vsub.f32 %v72, %v912
    %v914 = vand.u32 %v913, 4294901760
    %v915 = vsub.f32 %v913, %v914
    %v916 = vand.u32 %v915, 4294901760
    %917 = vmatpush1.msra.mxu0 %v916
    %918 = vmatprep.subr.mxu0 0.0
    %919 = vmatpush1.msra.mxu0 0.0
    %920 = vmatprep.subr.mxu0 0.0
    %921 = vmatpush1.msra.mxu0 0.0
    %922 = vmatprep.subr.mxu0 0.0
    %923 = vmatpush1.msra.mxu0 0.0
    %924 = vmatprep.subr.mxu0 0.0
    %925 = vmatpush1.msra.mxu0 0.0
    %926 = vmatprep.subr.mxu0 0.0
    %927 = vmatpush1.msra.mxu0 0.0
    %928 = vmatprep.subr.mxu0 0.0
    %929 = vmatpush1.msra.mxu0 0.0
    %930 = vmatprep.subr.mxu0 0.0
    %931 = vmatpush1.msra.mxu0 0.0
    %932 = vmatprep.subr.mxu0 0.0
    %933 = vmatpush1.msra.mxu0 0.0
    %934 = vmatprep.subr.mxu0 0.0
    %935 = vmatpush1.msra.mxu0 0.0
    %936 = vmatprep.subr.mxu0 0.0
    %937 = vmatpush1.msra.mxu0 0.0
    %938 = vmatprep.subr.mxu0 0.0
    %939 = vmatpush1.msra.mxu0 0.0
    %940 = vmatprep.subr.mxu0 0.0
    %941 = vmatpush1.msra.mxu0 0.0
    %942 = vmatprep.subr.mxu0 0.0
    %943 = vmatpush1.msra.mxu0 0.0
    %944 = vmatprep.subr.mxu0 0.0
    %945 = vmatpush1.msra.mxu0 0.0
    %946 = vmatprep.subr.mxu0 0.0
    %947 = vmatpush1.msra.mxu0 0.0
    %948 = vmatprep.subr.mxu0 0.0
    %949 = vmatpush1.msra.mxu0 0.0
    %950 = vmatprep.mubr.f32.mxu0 0.0
    %v951 = vand.u32 %v714, 4294901760
    %952 = vmatmul.mubr.f32.gmra.mrb[0].mxu0 %v951
    %v953 = vpop.f32.mrb[0].mxu0
    %v954 = vadd.f32 %v803, %v953
    %v955 = vpop.f32.mrb[0].mxu0
    %956 = vdwg.mxu0
    %957 = vmatprep.subr.mxu0 0.0
    %v958 = vand.u32 %v57, 4294901760
    %v959 = vsub.f32 %v57, %v958
    %960 = vmatpush1.msra.mxu0 %v959
    %961 = vmatprep.subr.mxu0 0.0
    %v962 = vand.u32 %v58, 4294901760
    %v963 = vsub.f32 %v58, %v962
    %964 = vmatpush1.msra.mxu0 %v963
    %965 = vmatprep.subr.mxu0 0.0
    %v966 = vand.u32 %v59, 4294901760
    %v967 = vsub.f32 %v59, %v966
    %968 = vmatpush1.msra.mxu0 %v967
    %969 = vmatprep.subr.mxu0 0.0
    %v970 = vand.u32 %v60, 4294901760
    %v971 = vsub.f32 %v60, %v970
    %972 = vmatpush1.msra.mxu0 %v971
    %973 = vmatprep.subr.mxu0 0.0
    %v974 = vand.u32 %v61, 4294901760
    %v975 = vsub.f32 %v61, %v974
    %976 = vmatpush1.msra.mxu0 %v975
    %977 = vmatprep.subr.mxu0 0.0
    %v978 = vand.u32 %v62, 4294901760
    %v979 = vsub.f32 %v62, %v978
    %980 = vmatpush1.msra.mxu0 %v979
    %981 = vmatprep.subr.mxu0 0.0
    %v982 = vand.u32 %v63, 4294901760
    %v983 = vsub.f32 %v63, %v982
    %984 = vmatpush1.msra.mxu0 %v983
    %985 = vmatprep.subr.mxu0 0.0
    %v986 = vand.u32 %v64, 4294901760
    %v987 = vsub.f32 %v64, %v986
    %988 = vmatpush1.msra.mxu0 %v987
    %989 = vmatprep.subr.mxu0 0.0
    %v990 = vand.u32 %v65, 4294901760
    %v991 = vsub.f32 %v65, %v990
    %992 = vmatpush1.msra.mxu0 %v991
    %993 = vmatprep.subr.mxu0 0.0
    %v994 = vand.u32 %v66, 4294901760
    %v995 = vsub.f32 %v66, %v994
    %996 = vmatpush1.msra.mxu0 %v995
    %997 = vmatprep.subr.mxu0 0.0
    %v998 = vand.u32 %v67, 4294901760
    %v999 = vsub.f32 %v67, %v998
    %1000 = vmatpush1.msra.mxu0 %v999
    %1001 = vmatprep.subr.mxu0 0.0
    %v1002 = vand.u32 %v68, 4294901760
    %v1003 = vsub.f32 %v68, %v1002
    %1004 = vmatpush1.msra.mxu0 %v1003
    %1005 = vmatprep.subr.mxu0 0.0
    %v1006 = vand.u32 %v69, 4294901760
    %v1007 = vsub.f32 %v69, %v1006
    %1008 = vmatpush1.msra.mxu0 %v1007
    %1009 = vmatprep.subr.mxu0 0.0
    %v1010 = vand.u32 %v70, 4294901760
    %v1011 = vsub.f32 %v70, %v1010
    %1012 = vmatpush1.msra.mxu0 %v1011
    %1013 = vmatprep.subr.mxu0 0.0
    %v1014 = vand.u32 %v71, 4294901760
    %v1015 = vsub.f32 %v71, %v1014
    %1016 = vmatpush1.msra.mxu0 %v1015
    %1017 = vmatprep.subr.mxu0 0.0
    %v1018 = vand.u32 %v72, 4294901760
    %v1019 = vsub.f32 %v72, %v1018
    %1020 = vmatpush1.msra.mxu0 %v1019
    %1021 = vmatprep.subr.mxu0 0.0
    %1022 = vmatpush1.msra.mxu0 0.0
    %1023 = vmatprep.subr.mxu0 0.0
    %1024 = vmatpush1.msra.mxu0 0.0
    %1025 = vmatprep.subr.mxu0 0.0
    %1026 = vmatpush1.msra.mxu0 0.0
    %1027 = vmatprep.subr.mxu0 0.0
    %1028 = vmatpush1.msra.mxu0 0.0
    %1029 = vmatprep.subr.mxu0 0.0
    %1030 = vmatpush1.msra.mxu0 0.0
    %1031 = vmatprep.subr.mxu0 0.0
    %1032 = vmatpush1.msra.mxu0 0.0
    %1033 = vmatprep.subr.mxu0 0.0
    %1034 = vmatpush1.msra.mxu0 0.0
    %1035 = vmatprep.subr.mxu0 0.0
    %1036 = vmatpush1.msra.mxu0 0.0
    %1037 = vmatprep.subr.mxu0 0.0
    %1038 = vmatpush1.msra.mxu0 0.0
    %1039 = vmatprep.subr.mxu0 0.0
    %1040 = vmatpush1.msra.mxu0 0.0
    %1041 = vmatprep.subr.mxu0 0.0
    %1042 = vmatpush1.msra.mxu0 0.0
    %1043 = vmatprep.subr.mxu0 0.0
    %1044 = vmatpush1.msra.mxu0 0.0
    %1045 = vmatprep.subr.mxu0 0.0
    %1046 = vmatpush1.msra.mxu0 0.0
    %1047 = vmatprep.subr.mxu0 0.0
    %1048 = vmatpush1.msra.mxu0 0.0
    %1049 = vmatprep.subr.mxu0 0.0
    %1050 = vmatpush1.msra.mxu0 0.0
    %1051 = vmatprep.subr.mxu0 0.0
    %1052 = vmatpush1.msra.mxu0 0.0
    %1053 = vmatprep.mubr.f32.mxu0 0.0
    %v1054 = vand.u32 %v714, 4294901760
    %v1055 = vsub.f32 %v714, %v1054
    %1056 = vmatmul.mubr.f32.gmra.mrb[0].mxu0 %v1055
    %v1057 = vpop.f32.mrb[0].mxu0
    %v1058 = vadd.f32 %v954, %v1057
    %v1059 = vpop.f32.mrb[0].mxu0
    %1060 = vdwg.mxu0
    %1061 = vmatprep.subr.mxu0 0.0
    %v1062 = vand.u32 %v57, 4294901760
    %1063 = vmatpush1.msra.mxu0 %v1062
    %1064 = vmatprep.subr.mxu0 0.0
    %v1065 = vand.u32 %v58, 4294901760
    %1066 = vmatpush1.msra.mxu0 %v1065
    %1067 = vmatprep.subr.mxu0 0.0
    %v1068 = vand.u32 %v59, 4294901760
    %1069 = vmatpush1.msra.mxu0 %v1068
    %1070 = vmatprep.subr.mxu0 0.0
    %v1071 = vand.u32 %v60, 4294901760
    %1072 = vmatpush1.msra.mxu0 %v1071
    %1073 = vmatprep.subr.mxu0 0.0
    %v1074 = vand.u32 %v61, 4294901760
    %1075 = vmatpush1.msra.mxu0 %v1074
    %1076 = vmatprep.subr.mxu0 0.0
    %v1077 = vand.u32 %v62, 4294901760
    %1078 = vmatpush1.msra.mxu0 %v1077
    %1079 = vmatprep.subr.mxu0 0.0
    %v1080 = vand.u32 %v63, 4294901760
    %1081 = vmatpush1.msra.mxu0 %v1080
    %1082 = vmatprep.subr.mxu0 0.0
    %v1083 = vand.u32 %v64, 4294901760
    %1084 = vmatpush1.msra.mxu0 %v1083
    %1085 = vmatprep.subr.mxu0 0.0
    %v1086 = vand.u32 %v65, 4294901760
    %1087 = vmatpush1.msra.mxu0 %v1086
    %1088 = vmatprep.subr.mxu0 0.0
    %v1089 = vand.u32 %v66, 4294901760
    %1090 = vmatpush1.msra.mxu0 %v1089
    %1091 = vmatprep.subr.mxu0 0.0
    %v1092 = vand.u32 %v67, 4294901760
    %1093 = vmatpush1.msra.mxu0 %v1092
    %1094 = vmatprep.subr.mxu0 0.0
    %v1095 = vand.u32 %v68, 4294901760
    %1096 = vmatpush1.msra.mxu0 %v1095
    %1097 = vmatprep.subr.mxu0 0.0
    %v1098 = vand.u32 %v69, 4294901760
    %1099 = vmatpush1.msra.mxu0 %v1098
    %1100 = vmatprep.subr.mxu0 0.0
    %v1101 = vand.u32 %v70, 4294901760
    %1102 = vmatpush1.msra.mxu0 %v1101
    %1103 = vmatprep.subr.mxu0 0.0
    %v1104 = vand.u32 %v71, 4294901760
    %1105 = vmatpush1.msra.mxu0 %v1104
    %1106 = vmatprep.subr.mxu0 0.0
    %v1107 = vand.u32 %v72, 4294901760
    %1108 = vmatpush1.msra.mxu0 %v1107
    %1109 = vmatprep.subr.mxu0 0.0
    %1110 = vmatpush1.msra.mxu0 0.0
    %1111 = vmatprep.subr.mxu0 0.0
    %1112 = vmatpush1.msra.mxu0 0.0
    %1113 = vmatprep.subr.mxu0 0.0
    %1114 = vmatpush1.msra.mxu0 0.0
    %1115 = vmatprep.subr.mxu0 0.0
    %1116 = vmatpush1.msra.mxu0 0.0
    %1117 = vmatprep.subr.mxu0 0.0
    %1118 = vmatpush1.msra.mxu0 0.0
    %1119 = vmatprep.subr.mxu0 0.0
    %1120 = vmatpush1.msra.mxu0 0.0
    %1121 = vmatprep.subr.mxu0 0.0
    %1122 = vmatpush1.msra.mxu0 0.0
    %1123 = vmatprep.subr.mxu0 0.0
    %1124 = vmatpush1.msra.mxu0 0.0
    %1125 = vmatprep.subr.mxu0 0.0
    %1126 = vmatpush1.msra.mxu0 0.0
    %1127 = vmatprep.subr.mxu0 0.0
    %1128 = vmatpush1.msra.mxu0 0.0
    %1129 = vmatprep.subr.mxu0 0.0
    %1130 = vmatpush1.msra.mxu0 0.0
    %1131 = vmatprep.subr.mxu0 0.0
    %1132 = vmatpush1.msra.mxu0 0.0
    %1133 = vmatprep.subr.mxu0 0.0
    %1134 = vmatpush1.msra.mxu0 0.0
    %1135 = vmatprep.subr.mxu0 0.0
    %1136 = vmatpush1.msra.mxu0 0.0
    %1137 = vmatprep.subr.mxu0 0.0
    %1138 = vmatpush1.msra.mxu0 0.0
    %1139 = vmatprep.subr.mxu0 0.0
    %1140 = vmatpush1.msra.mxu0 0.0
    %1141 = vmatprep.mubr.f32.mxu0 0.0
    %v1142 = vand.u32 %v714, 4294901760
    %v1143 = vsub.f32 %v714, %v1142
    %v1144 = vand.u32 %v1143, 4294901760
    %1145 = vmatmul.mubr.f32.gmra.mrb[0].mxu0 %v1144
    %v1146 = vpop.f32.mrb[0].mxu0
    %v1147 = vadd.f32 %v1058, %v1146
    %v1148 = vpop.f32.mrb[0].mxu0
    %1149 = vdwg.mxu0
    %1150 = vmatprep.subr.mxu0 0.0
    %v1151 = vand.u32 %v57, 4294901760
    %v1152 = vsub.f32 %v57, %v1151
    %v1153 = vand.u32 %v1152, 4294901760
    %1154 = vmatpush1.msra.mxu0 %v1153
    %1155 = vmatprep.subr.mxu0 0.0
    %v1156 = vand.u32 %v58, 4294901760
    %v1157 = vsub.f32 %v58, %v1156
    %v1158 = vand.u32 %v1157, 4294901760
    %1159 = vmatpush1.msra.mxu0 %v1158
    %1160 = vmatprep.subr.mxu0 0.0
    %v1161 = vand.u32 %v59, 4294901760
    %v1162 = vsub.f32 %v59, %v1161
    %v1163 = vand.u32 %v1162, 4294901760
    %1164 = vmatpush1.msra.mxu0 %v1163
    %1165 = vmatprep.subr.mxu0 0.0
    %v1166 = vand.u32 %v60, 4294901760
    %v1167 = vsub.f32 %v60, %v1166
    %v1168 = vand.u32 %v1167, 4294901760
    %1169 = vmatpush1.msra.mxu0 %v1168
    %1170 = vmatprep.subr.mxu0 0.0
    %v1171 = vand.u32 %v61, 4294901760
    %v1172 = vsub.f32 %v61, %v1171
    %v1173 = vand.u32 %v1172, 4294901760
    %1174 = vmatpush1.msra.mxu0 %v1173
    %1175 = vmatprep.subr.mxu0 0.0
    %v1176 = vand.u32 %v62, 4294901760
    %v1177 = vsub.f32 %v62, %v1176
    %v1178 = vand.u32 %v1177, 4294901760
    %1179 = vmatpush1.msra.mxu0 %v1178
    %1180 = vmatprep.subr.mxu0 0.0
    %v1181 = vand.u32 %v63, 4294901760
    %v1182 = vsub.f32 %v63, %v1181
    %v1183 = vand.u32 %v1182, 4294901760
    %1184 = vmatpush1.msra.mxu0 %v1183
    %1185 = vmatprep.subr.mxu0 0.0
    %v1186 = vand.u32 %v64, 4294901760
    %v1187 = vsub.f32 %v64, %v1186
    %v1188 = vand.u32 %v1187, 4294901760
    %1189 = vmatpush1.msra.mxu0 %v1188
    %1190 = vmatprep.subr.mxu0 0.0
    %v1191 = vand.u32 %v65, 4294901760
    %v1192 = vsub.f32 %v65, %v1191
    %v1193 = vand.u32 %v1192, 4294901760
    %1194 = vmatpush1.msra.mxu0 %v1193
    %1195 = vmatprep.subr.mxu0 0.0
    %v1196 = vand.u32 %v66, 4294901760
    %v1197 = vsub.f32 %v66, %v1196
    %v1198 = vand.u32 %v1197, 4294901760
    %1199 = vmatpush1.msra.mxu0 %v1198
    %1200 = vmatprep.subr.mxu0 0.0
    %v1201 = vand.u32 %v67, 4294901760
    %v1202 = vsub.f32 %v67, %v1201
    %v1203 = vand.u32 %v1202, 4294901760
    %1204 = vmatpush1.msra.mxu0 %v1203
    %1205 = vmatprep.subr.mxu0 0.0
    %v1206 = vand.u32 %v68, 4294901760
    %v1207 = vsub.f32 %v68, %v1206
    %v1208 = vand.u32 %v1207, 4294901760
    %1209 = vmatpush1.msra.mxu0 %v1208
    %1210 = vmatprep.subr.mxu0 0.0
    %v1211 = vand.u32 %v69, 4294901760
    %v1212 = vsub.f32 %v69, %v1211
    %v1213 = vand.u32 %v1212, 4294901760
    %1214 = vmatpush1.msra.mxu0 %v1213
    %1215 = vmatprep.subr.mxu0 0.0
    %v1216 = vand.u32 %v70, 4294901760
    %v1217 = vsub.f32 %v70, %v1216
    %v1218 = vand.u32 %v1217, 4294901760
    %1219 = vmatpush1.msra.mxu0 %v1218
    %1220 = vmatprep.subr.mxu0 0.0
    %v1221 = vand.u32 %v71, 4294901760
    %v1222 = vsub.f32 %v71, %v1221
    %v1223 = vand.u32 %v1222, 4294901760
    %1224 = vmatpush1.msra.mxu0 %v1223
    %1225 = vmatprep.subr.mxu0 0.0
    %v1226 = vand.u32 %v72, 4294901760
    %v1227 = vsub.f32 %v72, %v1226
    %v1228 = vand.u32 %v1227, 4294901760
    %1229 = vmatpush1.msra.mxu0 %v1228
    %1230 = vmatprep.subr.mxu0 0.0
    %1231 = vmatpush1.msra.mxu0 0.0
    %1232 = vmatprep.subr.mxu0 0.0
    %1233 = vmatpush1.msra.mxu0 0.0
    %1234 = vmatprep.subr.mxu0 0.0
    %1235 = vmatpush1.msra.mxu0 0.0
    %1236 = vmatprep.subr.mxu0 0.0
    %1237 = vmatpush1.msra.mxu0 0.0
    %1238 = vmatprep.subr.mxu0 0.0
    %1239 = vmatpush1.msra.mxu0 0.0
    %1240 = vmatprep.subr.mxu0 0.0
    %1241 = vmatpush1.msra.mxu0 0.0
    %1242 = vmatprep.subr.mxu0 0.0
    %1243 = vmatpush1.msra.mxu0 0.0
    %1244 = vmatprep.subr.mxu0 0.0
    %1245 = vmatpush1.msra.mxu0 0.0
    %1246 = vmatprep.subr.mxu0 0.0
    %1247 = vmatpush1.msra.mxu0 0.0
    %1248 = vmatprep.subr.mxu0 0.0
    %1249 = vmatpush1.msra.mxu0 0.0
    %1250 = vmatprep.subr.mxu0 0.0
    %1251 = vmatpush1.msra.mxu0 0.0
    %1252 = vmatprep.subr.mxu0 0.0
    %1253 = vmatpush1.msra.mxu0 0.0
    %1254 = vmatprep.subr.mxu0 0.0
    %1255 = vmatpush1.msra.mxu0 0.0
    %1256 = vmatprep.subr.mxu0 0.0
    %1257 = vmatpush1.msra.mxu0 0.0
    %1258 = vmatprep.subr.mxu0 0.0
    %1259 = vmatpush1.msra.mxu0 0.0
    %1260 = vmatprep.subr.mxu0 0.0
    %1261 = vmatpush1.msra.mxu0 0.0
    %1262 = vmatprep.mubr.f32.mxu0 0.0
    %v1263 = vand.u32 %v714, 4294901760
    %1264 = vmatmul.mubr.f32.gmra.mrb[0].mxu0 %v1263
    %v1265 = vpop.f32.mrb[0].mxu0
    %v1266 = vadd.f32 %v1147, %v1265
    %v1267 = vpop.f32.mrb[0].mxu0
    %1268 = vdwg.mxu0
    %1269 = vmatprep.subr.mxu0 0.0
    %v1270 = vand.u32 %v57, 4294901760
    %1271 = vmatpush1.msra.mxu0 %v1270
    %1272 = vmatprep.subr.mxu0 0.0
    %v1273 = vand.u32 %v58, 4294901760
    %1274 = vmatpush1.msra.mxu0 %v1273
    %1275 = vmatprep.subr.mxu0 0.0
    %v1276 = vand.u32 %v59, 4294901760
    %1277 = vmatpush1.msra.mxu0 %v1276
    %1278 = vmatprep.subr.mxu0 0.0
    %v1279 = vand.u32 %v60, 4294901760
    %1280 = vmatpush1.msra.mxu0 %v1279
    %1281 = vmatprep.subr.mxu0 0.0
    %v1282 = vand.u32 %v61, 4294901760
    %1283 = vmatpush1.msra.mxu0 %v1282
    %1284 = vmatprep.subr.mxu0 0.0
    %v1285 = vand.u32 %v62, 4294901760
    %1286 = vmatpush1.msra.mxu0 %v1285
    %1287 = vmatprep.subr.mxu0 0.0
    %v1288 = vand.u32 %v63, 4294901760
    %1289 = vmatpush1.msra.mxu0 %v1288
    %1290 = vmatprep.subr.mxu0 0.0
    %v1291 = vand.u32 %v64, 4294901760
    %1292 = vmatpush1.msra.mxu0 %v1291
    %1293 = vmatprep.subr.mxu0 0.0
    %v1294 = vand.u32 %v65, 4294901760
    %1295 = vmatpush1.msra.mxu0 %v1294
    %1296 = vmatprep.subr.mxu0 0.0
    %v1297 = vand.u32 %v66, 4294901760
    %1298 = vmatpush1.msra.mxu0 %v1297
    %1299 = vmatprep.subr.mxu0 0.0
    %v1300 = vand.u32 %v67, 4294901760
    %1301 = vmatpush1.msra.mxu0 %v1300
    %1302 = vmatprep.subr.mxu0 0.0
    %v1303 = vand.u32 %v68, 4294901760
    %1304 = vmatpush1.msra.mxu0 %v1303
    %1305 = vmatprep.subr.mxu0 0.0
    %v1306 = vand.u32 %v69, 4294901760
    %1307 = vmatpush1.msra.mxu0 %v1306
    %1308 = vmatprep.subr.mxu0 0.0
    %v1309 = vand.u32 %v70, 4294901760
    %1310 = vmatpush1.msra.mxu0 %v1309
    %1311 = vmatprep.subr.mxu0 0.0
    %v1312 = vand.u32 %v71, 4294901760
    %1313 = vmatpush1.msra.mxu0 %v1312
    %1314 = vmatprep.subr.mxu0 0.0
    %v1315 = vand.u32 %v72, 4294901760
    %1316 = vmatpush1.msra.mxu0 %v1315
    %1317 = vmatprep.subr.mxu0 0.0
    %1318 = vmatpush1.msra.mxu0 0.0
    %1319 = vmatprep.subr.mxu0 0.0
    %1320 = vmatpush1.msra.mxu0 0.0
    %1321 = vmatprep.subr.mxu0 0.0
    %1322 = vmatpush1.msra.mxu0 0.0
    %1323 = vmatprep.subr.mxu0 0.0
    %1324 = vmatpush1.msra.mxu0 0.0
    %1325 = vmatprep.subr.mxu0 0.0
    %1326 = vmatpush1.msra.mxu0 0.0
    %1327 = vmatprep.subr.mxu0 0.0
    %1328 = vmatpush1.msra.mxu0 0.0
    %1329 = vmatprep.subr.mxu0 0.0
    %1330 = vmatpush1.msra.mxu0 0.0
    %1331 = vmatprep.subr.mxu0 0.0
    %1332 = vmatpush1.msra.mxu0 0.0
    %1333 = vmatprep.subr.mxu0 0.0
    %1334 = vmatpush1.msra.mxu0 0.0
    %1335 = vmatprep.subr.mxu0 0.0
    %1336 = vmatpush1.msra.mxu0 0.0
    %1337 = vmatprep.subr.mxu0 0.0
    %1338 = vmatpush1.msra.mxu0 0.0
    %1339 = vmatprep.subr.mxu0 0.0
    %1340 = vmatpush1.msra.mxu0 0.0
    %1341 = vmatprep.subr.mxu0 0.0
    %1342 = vmatpush1.msra.mxu0 0.0
    %1343 = vmatprep.subr.mxu0 0.0
    %1344 = vmatpush1.msra.mxu0 0.0
    %1345 = vmatprep.subr.mxu0 0.0
    %1346 = vmatpush1.msra.mxu0 0.0
    %1347 = vmatprep.subr.mxu0 0.0
    %1348 = vmatpush1.msra.mxu0 0.0
    %1349 = vmatprep.mubr.f32.mxu0 0.0
    %v1350 = vand.u32 %v714, 4294901760
    %1351 = vmatmul.mubr.f32.gmra.mrb[0].mxu0 %v1350
    %v1352 = vpop.f32.mrb[0].mxu0
    %v1353 = vadd.f32 %v1266, %v1352
    %v1354 = vpop.f32.mrb[0].mxu0
    %1355 = vdwg.mxu0
    %v1356 = vmul.f32 %v711, 0.03125
    %v1357 = vmul.f32 %v1353, 0.03125
    %v1358 = vmul.f32 %v1356, %v1356
    %v1359 = vsub.f32 %v1357, %v1358
    %v1360 = vmax.f32 %v1359, 0.0
    %v1361 = vsub.f32 %v52, %v1356
    %v1362 = vadd.f32 %v1360, 1e-05
    %v1363 = vrsqrt.pop %v1362
    %v1364 = vmul.f32 %v1361, %v1363
    %v1365 = vlaneseq
    %v1366 = vshrl.u32 %v1365, 7
    %v1367 = vsub.s32 0, %v1366
    %v1368 = vrot.slane %v53, %v1367
    %v1369 = vmul.f32 %v1364, %v1368
    %v1370 = vlaneseq
    %v1371 = vshrl.u32 %v1370, 7
    %v1372 = vsub.s32 0, %v1371
    %v1373 = vrot.slane %v54, %v1372
    %v1374 = vadd.f32 %v1369, %v1373
    %v1375 = vand.u32 2147483647, %v1374
    %v1376 = vlaneseq
    %v1377 = vshrl.u32 %v1376, 7
    %v1378 = vsub.s32 0, %v1377
    %v1379 = vrot.slane %v55, %v1378
    %v1380 = vsub.f32 %v1375, %v1379
    %v1381 = vmul.f32 %v1380, 0.5
    %v1382 = vtanh.pop %v1381
    %v1383 = vadd.f32 %v1382, 1.0
    %v1384 = vmul.f32 %v1383, 0.5
    %v1385 = vsub.f32 %v1384, 1.0
    %v1386 = vlaneseq
    %v1387 = vshrl.u32 %v1386, 7
    %v1388 = vsub.s32 0, %v1387
    %v1389 = vrot.slane %v56, %v1388
    %v1390 = vmul.f32 %v1389, %v1385
    %v1391 = vadd.f32 %v1390, 1.0
    %v1392 = vmul.f32 %v52, %v1391
    %v1393 = vmax.f32 %v1392, -100.0
    %v1394 = vmin.f32 %v1393, 100.0
    %1395 = vst [vmem:[#allocation8] sm:$0xf] %v1394
    // Predicated region
    $region26: #{tpu_custom_call.1} parent=1 // pred_check
      _
    $region27: #{tpu_custom_call.1} parent=1 // pred_check_branch
      %1397 = sbr.rel (0) target = $region29
    $region28: #{tpu_custom_call.1} parent=1 // pred_region
      %s1399 = ssub.s32 64, 64
      %1400 = vsyncadd [#allocation4], %s1399
      %s1402 = sshll.u32 [#allocation8], 4
      %s1403 = int_to_ptr.vmem [resolvable:$true] %s1402
      %1405 = dma.vmem_to_hbm [thread:$0]  %s1403, 64, %s3, [#allocation4]
    $region29: #{tpu_custom_call.1} parent=1 // pred_fallthru
      _
    // Predicated region
    $region30: #{tpu_custom_call.1} parent=1 // pred_check
      _
    $region31: #{tpu_custom_call.1} parent=1 // pred_check_branch
      %1407 = sbr.rel (0) target = $region33
    $region32: #{tpu_custom_call.1} parent=1 // pred_region
      %1408 = dma.done [#allocation4], 64
    $region33: #{tpu_custom_call.1} parent=1 // pred_fallthru
      _
    %1409 = vsyncpa [#allocation3], 1
    %1410 = vsyncpa [#allocation6], 1
    %1411 = vsyncpa [#allocation4], 1

</llo_original>
